<compile_context>
chip_gen: v7x
topology: tpu7x:2x2x1
jax: 0.10.0
libtpu: 0.0.40
codegen_flags: <defaults>
</compile_context>

<pallas_src>
import numpy as np
import jax
import jax.numpy as jnp
from jax.experimental import pallas as pl
from jax.experimental.pallas import tpu as pltpu

NEG_SLOPE = 0.01   # nn.LeakyReLU() default
EPS = 1e-5         # nn.InstanceNorm2d default


def _interp_matrix(n_in, n_out):
    """Row-interpolation matrix for bilinear resize with align_corners=True."""
    A = np.zeros((n_out, n_in), np.float32)
    if n_out == 1 or n_in == 1:
        A[:, 0] = 1.0
        return A
    scale = (n_in - 1) / (n_out - 1)
    for i in range(n_out):
        s = i * scale
        j0 = min(int(np.floor(s)), n_in - 1)
        j1 = min(j0 + 1, n_in - 1)
        w = s - j0
        A[i, j0] += 1.0 - w
        A[i, j1] += w
    return A


def _make_kernel(H, H2, W2, O_blk):
    inv_n = 1.0 / float(H2 * W2)

    def kernel(x_ref, b_ref, ah_ref, g_ref, bt_ref, out_ref, s_ref):
        # x_ref:   (1, H, CWp)           VMEM bf16  input, columns ordered (c, w), zero-padded
        # b_ref:   (O_blk, 3, CWp, W2)   VMEM bf16  conv-weights x col-interp, per (o, row-tap)
        # ah_ref:  (H2, 3*H)             VMEM bf16  concat of row-interp taps (zero pad folded)
        # g_ref:   (O,)                  SMEM f32   InstanceNorm gamma
        # bt_ref:  (O,)                  SMEM f32   InstanceNorm beta
        # out_ref: (1, O_blk, H2, W2)    VMEM f32   O_blk output channels of one sample
        # s_ref:   (3*H, W2)             VMEM bf16  stacked stage-1 results (per channel)
        ob = pl.program_id(0)
        x2 = x_ref[0]                                              # (H, CWp) bf16
        ah = ah_ref[...]                                           # (H2, 3H) bf16

        # TODO(synk): for larger O_blk switch this static unroll to
        # lax.fori_loop(..., unroll=True) so live ranges stay bounded.
        for oi in range(O_blk):
            # Stage 1: per row-tap, contract (channel, col-tap, col-interp) on the MXU.
            for ki in range(3):
                s = jnp.dot(x2, b_ref[oi, ki],
                            preferred_element_type=jnp.float32)   # (H, W2) f32
                s_ref[ki * H:(ki + 1) * H, :] = s.astype(jnp.bfloat16)

            # Stage 2: fused row-interp over all 3 taps in a single dot.
            acc = jnp.dot(ah, s_ref[...],
                          preferred_element_type=jnp.float32)     # (H2, W2) f32

            # InstanceNorm (two-pass variance) + affine + LeakyReLU, all in f32.
            mean = jnp.sum(acc, keepdims=True) * inv_n             # (1, 1)
            cen = acc - mean
            var = jnp.sum(cen * cen, keepdims=True) * inv_n        # (1, 1)
            o = ob * O_blk + oi
            y = cen * jax.lax.rsqrt(var + EPS)
            y = y * g_ref[o] + bt_ref[o]
            out_ref[0, oi] = jnp.where(y >= 0, y, NEG_SLOPE * y)

    return kernel


def upsample_forward(x, ori, w_conv, b_conv, gamma, beta):
    # Conv bias is exactly cancelled by InstanceNorm's per-channel mean subtraction
    # (valid ONLY while an instance/mean-subtracting norm follows the conv).
    del b_conv
    N, C, H, W = x.shape
    O = w_conv.shape[0]
    _, Cori, H2, W2 = ori.shape
    assert H2 == 2 * H and W2 == 2 * W

    # Static bilinear (align_corners=True) interp matrices with the conv's zero
    # padding folded in, sliced per 3x3 tap so that
    #   shifted_window(up_pad[c], ki, kj) = Ah_taps[ki] @ x[c] @ AwT_taps[kj].
    Ah = _interp_matrix(H, H2)                                     # (H2, H)
    Aw = _interp_matrix(W, W2)                                     # (W2, W)
    Ah_pad = np.zeros((H2 + 2, H), np.float32); Ah_pad[1:-1] = Ah
    AwT_pad = np.zeros((W, W2 + 2), np.float32); AwT_pad[:, 1:-1] = Aw.T
    ah_taps = np.stack([Ah_pad[ki:ki + H2] for ki in range(3)])          # (3, H2, H)
    awt_taps = np.stack([AwT_pad[:, kj:kj + W2] for kj in range(3)])     # (3, W, W2)

    # Pre-concatenate the row-taps so stage-2 is a single (H2, 3H) @ (3H, W2) dot.
    ah_cat = np.concatenate([ah_taps[0], ah_taps[1], ah_taps[2]], axis=1)  # (H2, 3H)

    # Fold conv weights with the column-interp taps (tiny one-time wrapper op):
    #   bfull[o, ki, c*W + w, j] = sum_kj w_conv[o, c, ki, kj] * awt_taps[kj, w, j]
    bfull = jnp.einsum('ocik,kwj->oicwj', w_conv, jnp.asarray(awt_taps),
                       precision=jax.lax.Precision.HIGHEST)
    bfull = bfull.reshape(O, 3, C * W, W2)

    # Layout plumbing (wrapper side, free for XLA): x -> (N, H, C*W), cols = (c, w),
    # then zero-pad the contraction dim to a multiple of 128 for lane-dense operands.
    x_t = jnp.transpose(x, (0, 2, 1, 3)).reshape(N, H, C * W)
    CW = C * W
    CWp = max(128, ((CW + 127) // 128) * 128)
    if CWp != CW:
        x_t = jnp.pad(x_t, ((0, 0), (0, 0), (0, CWp - CW)))
        bfull = jnp.pad(bfull, ((0, 0), (0, 0), (0, CWp - CW), (0, 0)))

    # bf16 operands for MXU-native matmuls; accumulation stays f32 in-kernel.
    x_t = x_t.astype(jnp.bfloat16)
    bfull = bfull.astype(jnp.bfloat16)
    ah_cat_j = jnp.asarray(ah_cat, jnp.bfloat16)

    # Output-channel blocking: amortize per-step pipeline overhead, widen output DMA.
    O_blk = next(c for c in (8, 4, 2, 1) if O % c == 0)
    num_ob = O // O_blk

    flops_per_no = (3 * 2 * H * CWp * W2      # stage-1 dots
                    + 2 * H2 * (3 * H) * W2   # fused stage-2 dot
                    + 8 * H2 * W2)            # IN + affine + LeakyReLU
    cost = pl.CostEstimate(
        flops=int(N * O * flops_per_no),
        transcendentals=int(N * O),           # one rsqrt per (n, o)
        bytes_accessed=int(
            2 * x_t.size * num_ob             # x re-streamed once per O-block
            + 2 * bfull.size                  # weights resident across batch -> once
            + 2 * ah_cat_j.size
            + 4 * (gamma.size + beta.size)
            + 4 * N * O * H2 * W2),
    )

    smem = pl.BlockSpec(memory_space=pltpu.MemorySpace.SMEM)
    y = pl.pallas_call(
        _make_kernel(H, H2, W2, O_blk),
        out_shape=jax.ShapeDtypeStruct((N, O, H2, W2), jnp.float32),
        # O-blocks on the slow axis, batch on the fast axis: the folded-weight
        # block index is constant along the batch axis, so it stays resident.
        grid=(num_ob, N),
        in_specs=[
            pl.BlockSpec((1, H, CWp), lambda ob, n: (n, 0, 0)),
            pl.BlockSpec((O_blk, 3, CWp, W2), lambda ob, n: (ob, 0, 0, 0)),
            pl.BlockSpec((H2, 3 * H), lambda ob, n: (0, 0)),
            smem, smem,
        ],
        out_specs=pl.BlockSpec((1, O_blk, H2, W2), lambda ob, n: (n, ob, 0, 0)),
        scratch_shapes=[pltpu.VMEM((3 * H, W2), jnp.bfloat16)],
        compiler_params=pltpu.CompilerParams(
            dimension_semantics=("parallel", "parallel"),
            # Per-step footprint here is < 1 MiB, so this cap is not binding.
            # TODO(synk): at production sizes budget per generation (grow toward
            # ~100 MiB on v5e/v6e, K-tile the contraction for v7x's 64 MiB).
            vmem_limit_bytes=32 * 1024 * 1024,
        ),
        cost_estimate=cost,
    )(x_t, bfull, ah_cat_j, gamma, beta)

    # Skip connection concat stays at the XLA level (no HBM round trip via VMEM).
    return jnp.concatenate([ori, y], axis=1)


def upsample_reference(x, ori, w_conv, b_conv, gamma, beta):
    """Pure-JAX f32 reference (mirrors the PyTorch forward)."""
    N, C, H, W = x.shape
    H2, W2 = 2 * H, 2 * W
    Ah = jnp.asarray(_interp_matrix(H, H2))
    Aw = jnp.asarray(_interp_matrix(W, W2))
    u = jnp.einsum('ih,nchw,jw->ncij', Ah, x, Aw)
    y = jax.lax.conv_general_dilated(
        u, w_conv, window_strides=(1, 1), padding='SAME',
        dimension_numbers=('NCHW', 'OIHW', 'NCHW'))
    y = y + b_conv[None, :, None, None]
    mean = y.mean(axis=(2, 3), keepdims=True)
    var = ((y - mean) ** 2).mean(axis=(2, 3), keepdims=True)
    y = (y - mean) / jnp.sqrt(var + EPS)
    y = y * gamma[None, :, None, None] + beta[None, :, None, None]
    y = jnp.where(y >= 0, y, NEG_SLOPE * y)
    return jnp.concatenate([ori, y], axis=1)


if __name__ == "__main__":
    N, in_ch, H, W = 2, 4, 16, 16
    out_ch = in_ch // 2
    H2, W2 = 2 * H, 2 * W

    key = jax.random.PRNGKey(0)
    k1, k2, k3, k4, k5, k6 = jax.random.split(key, 6)
    w_conv = 0.1 * jax.random.normal(k1, (out_ch, in_ch, 3, 3), jnp.float32)
    b_conv = 0.1 * jax.random.normal(k2, (out_ch,), jnp.float32)
    gamma = 1.0 + 0.1 * jax.random.normal(k3, (out_ch,), jnp.float32)
    beta = 0.1 * jax.random.normal(k4, (out_ch,), jnp.float32)
    x = jax.random.normal(k5, (N, in_ch, H, W), jnp.float32)
    ori = jax.random.normal(k6, (N, out_ch, H2, W2), jnp.float32)

    out = upsample_forward(x, ori, w_conv, b_conv, gamma, beta)
    out = jax.block_until_ready(out)

    ref = jax.block_until_ready(upsample_reference(x, ori, w_conv, b_conv, gamma, beta))
    assert out.shape == (N, out_ch + out_ch, H2, W2), out.shape
    # bf16 matmul operands with f32 accumulation: tolerance loosened accordingly.
    np.testing.assert_allclose(np.asarray(out), np.asarray(ref), rtol=2e-2, atol=2e-2)

    print("KERNEL_OK")
</pallas_src>

<mosaic_0001>
module attributes {stable_mosaic.version = 11 : i64} {
  func.func @kernel(%arg0: i32, %arg1: i32, %arg2: memref<1x16x128xbf16, #tpu.memory_space<vmem>>, %arg3: memref<2x3x128x32xbf16, #tpu.memory_space<vmem>>, %arg4: memref<32x48xbf16, #tpu.memory_space<vmem>>, %arg5: memref<2xf32, #tpu.memory_space<smem>>, %arg6: memref<2xf32, #tpu.memory_space<smem>>, %arg7: memref<1x2x32x32xf32, #tpu.memory_space<vmem>>, %arg8: memref<48x32xbf16, #tpu.memory_space<vmem>>) attributes {dimension_semantics = [#tpu.dimension_semantics<parallel>, #tpu.dimension_semantics<parallel>], iteration_bounds = array<i64: 1, 2>, scalar_prefetch = 0 : i64, scratch_operands = 1 : i64, tpu.core_type = #tpu.core_type<tc>, window_params = [{transform_indices = @transform_0, window_bounds = array<i64: 1, 16, 128>}, {transform_indices = @transform_1, window_bounds = array<i64: 2, 3, 128, 32>}, {pipeline_mode = #tpu.pipeline_mode<synchronous>, transform_indices = @transform_2, window_bounds = array<i64: 32, 48>}, {transform_indices = @transform_3, window_bounds = array<i64: 2>}, {transform_indices = @transform_4, window_bounds = array<i64: 2>}, {transform_indices = @transform_5, window_bounds = array<i64: 1, 2, 32, 32>}]} {
    %c0 = arith.constant 0 : index
    %c0_0 = arith.constant 0 : index
    %c0_1 = arith.constant 0 : index
    %0 = vector.load %arg2[%c0, %c0_0, %c0_1] : memref<1x16x128xbf16, #tpu.memory_space<vmem>>, vector<1x16x128xbf16>
    %1 = vector.shape_cast %0 : vector<1x16x128xbf16> to vector<16x128xbf16>
    %c0_2 = arith.constant 0 : index
    %c0_3 = arith.constant 0 : index
    %2 = vector.load %arg4[%c0_2, %c0_3] : memref<32x48xbf16, #tpu.memory_space<vmem>>, vector<32x48xbf16>
    %c0_4 = arith.constant 0 : index
    %c0_5 = arith.constant 0 : index
    %c0_6 = arith.constant 0 : index
    %c0_7 = arith.constant 0 : index
    %3 = vector.load %arg3[%c0_4, %c0_5, %c0_6, %c0_7] : memref<2x3x128x32xbf16, #tpu.memory_space<vmem>>, vector<1x1x128x32xbf16>
    %4 = vector.shape_cast %3 : vector<1x1x128x32xbf16> to vector<128x32xbf16>
    %cst = arith.constant dense<0.000000e+00> : vector<16x32xf32>
    %5 = tpu.matmul %1, %4, %cst {dimension_numbers = #tpu.dot_dimension_numbers<[1], [0], [0], [1], [0, 0, 1, 1], [], []>} : vector<16x128xbf16>, vector<128x32xbf16>, vector<16x32xf32> -> vector<16x32xf32>
    %6 = arith.truncf %5 : vector<16x32xf32> to vector<16x32xbf16>
    %c0_8 = arith.constant 0 : index
    %c0_9 = arith.constant 0 : index
    %7 = vector.load %arg8[%c0_8, %c0_9] : memref<48x32xbf16, #tpu.memory_space<vmem>>, vector<16x32xbf16>
    tpu.vector_store %arg8[%c0_8, %c0_9], %6 {strides = array<i32>} : memref<48x32xbf16, #tpu.memory_space<vmem>>, vector<16x32xbf16>,
    %c0_10 = arith.constant 0 : index
    %c1 = arith.constant 1 : index
    %c0_11 = arith.constant 0 : index
    %c0_12 = arith.constant 0 : index
    %8 = vector.load %arg3[%c0_10, %c1, %c0_11, %c0_12] : memref<2x3x128x32xbf16, #tpu.memory_space<vmem>>, vector<1x1x128x32xbf16>
    %9 = vector.shape_cast %8 : vector<1x1x128x32xbf16> to vector<128x32xbf16>
    %cst_13 = arith.constant dense<0.000000e+00> : vector<16x32xf32>
    %10 = tpu.matmul %1, %9, %cst_13 {dimension_numbers = #tpu.dot_dimension_numbers<[1], [0], [0], [1], [0, 0, 1, 1], [], []>} : vector<16x128xbf16>, vector<128x32xbf16>, vector<16x32xf32> -> vector<16x32xf32>
    %11 = arith.truncf %10 : vector<16x32xf32> to vector<16x32xbf16>
    %c16 = arith.constant 16 : index
    %c0_14 = arith.constant 0 : index
    %12 = vector.load %arg8[%c16, %c0_14] : memref<48x32xbf16, #tpu.memory_space<vmem>>, vector<16x32xbf16>
    tpu.vector_store %arg8[%c16, %c0_14], %11 {strides = array<i32>} : memref<48x32xbf16, #tpu.memory_space<vmem>>, vector<16x32xbf16>,
    %c0_15 = arith.constant 0 : index
    %c2 = arith.constant 2 : index
    %c0_16 = arith.constant 0 : index
    %c0_17 = arith.constant 0 : index
    %13 = vector.load %arg3[%c0_15, %c2, %c0_16, %c0_17] : memref<2x3x128x32xbf16, #tpu.memory_space<vmem>>, vector<1x1x128x32xbf16>
    %14 = vector.shape_cast %13 : vector<1x1x128x32xbf16> to vector<128x32xbf16>
    %cst_18 = arith.constant dense<0.000000e+00> : vector<16x32xf32>
    %15 = tpu.matmul %1, %14, %cst_18 {dimension_numbers = #tpu.dot_dimension_numbers<[1], [0], [0], [1], [0, 0, 1, 1], [], []>} : vector<16x128xbf16>, vector<128x32xbf16>, vector<16x32xf32> -> vector<16x32xf32>
    %16 = arith.truncf %15 : vector<16x32xf32> to vector<16x32xbf16>
    %c32 = arith.constant 32 : index
    %c0_19 = arith.constant 0 : index
    %17 = vector.load %arg8[%c32, %c0_19] : memref<48x32xbf16, #tpu.memory_space<vmem>>, vector<16x32xbf16>
    tpu.vector_store %arg8[%c32, %c0_19], %16 {strides = array<i32>} : memref<48x32xbf16, #tpu.memory_space<vmem>>, vector<16x32xbf16>,
    %c0_20 = arith.constant 0 : index
    %c0_21 = arith.constant 0 : index
    %18 = vector.load %arg8[%c0_20, %c0_21] : memref<48x32xbf16, #tpu.memory_space<vmem>>, vector<48x32xbf16>
    %cst_22 = arith.constant dense<0.000000e+00> : vector<32x32xf32>
    %19 = tpu.matmul %2, %18, %cst_22 {dimension_numbers = #tpu.dot_dimension_numbers<[1], [0], [0], [1], [0, 0, 1, 1], [], []>} : vector<32x48xbf16>, vector<48x32xbf16>, vector<32x32xf32> -> vector<32x32xf32>
    %20 = vector.shape_cast %19 : vector<32x32xf32> to vector<1x32x32xf32>
    %cst_23 = arith.constant dense<0.000000e+00> : vector<1xf32>
    %21 = vector.multi_reduction <add>, %20, %cst_23 [1, 2] : vector<1x32x32xf32> to vector<1xf32>
    %22 = vector.shape_cast %21 : vector<1xf32> to vector<1x1x1xf32>
    %23 = vector.extract %22[0, 0, 0] : f32 from vector<1x1x1xf32>
    %24 = vector.broadcast %23 : f32 to vector<1x1xf32>
    %cst_24 = arith.constant 9.765625E-4 : f32
    %25 = vector.broadcast %cst_24 : f32 to vector<1x1xf32>
    %26 = arith.mulf %24, %25 : vector<1x1xf32>
    %27 = vector.broadcast %26 : vector<1x1xf32> to vector<32x32xf32>
    %28 = arith.subf %19, %27 : vector<32x32xf32>
    %29 = arith.mulf %28, %28 : vector<32x32xf32>
    %30 = vector.shape_cast %29 : vector<32x32xf32> to vector<1x32x32xf32>
    %cst_25 = arith.constant dense<0.000000e+00> : vector<1xf32>
    %31 = vector.multi_reduction <add>, %30, %cst_25 [1, 2] : vector<1x32x32xf32> to vector<1xf32>
    %32 = vector.shape_cast %31 : vector<1xf32> to vector<1x1x1xf32>
    %33 = vector.extract %32[0, 0, 0] : f32 from vector<1x1x1xf32>
    %34 = vector.broadcast %33 : f32 to vector<1x1xf32>
    %cst_26 = arith.constant 9.765625E-4 : f32
    %35 = vector.broadcast %cst_26 : f32 to vector<1x1xf32>
    %36 = arith.mulf %34, %35 : vector<1x1xf32>
    %c2_i32 = arith.constant 2 : i32
    %37 = arith.muli %arg0, %c2_i32 : i32
    %c0_i32 = arith.constant 0 : i32
    %38 = arith.addi %37, %c0_i32 : i32
    %cst_27 = arith.constant 9.99999974E-6 : f32
    %39 = vector.broadcast %cst_27 : f32 to vector<1x1xf32>
    %40 = arith.addf %36, %39 : vector<1x1xf32>
    %41 = math.rsqrt %40 : vector<1x1xf32>
    %42 = vector.broadcast %41 : vector<1x1xf32> to vector<32x32xf32>
    %43 = arith.mulf %28, %42 : vector<32x32xf32>
    %44 = arith.index_cast %38 : i32 to index
    %45 = memref.load %arg5[%44] : memref<2xf32, #tpu.memory_space<smem>>
    %46 = vector.broadcast %45 : f32 to vector<32x32xf32>
    %47 = arith.mulf %43, %46 : vector<32x32xf32>
    %48 = arith.index_cast %38 : i32 to index
    %49 = memref.load %arg6[%48] : memref<2xf32, #tpu.memory_space<smem>>
    %50 = vector.broadcast %49 : f32 to vector<32x32xf32>
    %51 = arith.addf %47, %50 : vector<32x32xf32>
    %cst_28 = arith.constant 0.000000e+00 : f32
    %52 = vector.broadcast %cst_28 : f32 to vector<32x32xf32>
    %53 = arith.cmpf oge, %51, %52 : vector<32x32xf32>
    %cst_29 = arith.constant 0.00999999977 : f32
    %54 = vector.broadcast %cst_29 : f32 to vector<32x32xf32>
    %55 = arith.mulf %54, %51 : vector<32x32xf32>
    %56 = arith.select %53, %51, %55 : vector<32x32xi1>, vector<32x32xf32>
    %c0_30 = arith.constant 0 : index
    %c0_31 = arith.constant 0 : index
    %c0_32 = arith.constant 0 : index
    %c0_33 = arith.constant 0 : index
    %57 = vector.load %arg7[%c0_30, %c0_31, %c0_32, %c0_33] : memref<1x2x32x32xf32, #tpu.memory_space<vmem>>, vector<1x1x32x32xf32>
    %58 = vector.shape_cast %57 : vector<1x1x32x32xf32> to vector<32x32xf32>
    %59 = vector.shape_cast %56 : vector<32x32xf32> to vector<1x1x32x32xf32>
    tpu.vector_store %arg7[%c0_30, %c0_31, %c0_32, %c0_33], %59 {strides = array<i32>} : memref<1x2x32x32xf32, #tpu.memory_space<vmem>>, vector<1x1x32x32xf32>,
    %c1_34 = arith.constant 1 : index
    %c0_35 = arith.constant 0 : index
    %c0_36 = arith.constant 0 : index
    %c0_37 = arith.constant 0 : index
    %60 = vector.load %arg3[%c1_34, %c0_35, %c0_36, %c0_37] : memref<2x3x128x32xbf16, #tpu.memory_space<vmem>>, vector<1x1x128x32xbf16>
    %61 = vector.shape_cast %60 : vector<1x1x128x32xbf16> to vector<128x32xbf16>
    %cst_38 = arith.constant dense<0.000000e+00> : vector<16x32xf32>
    %62 = tpu.matmul %1, %61, %cst_38 {dimension_numbers = #tpu.dot_dimension_numbers<[1], [0], [0], [1], [0, 0, 1, 1], [], []>} : vector<16x128xbf16>, vector<128x32xbf16>, vector<16x32xf32> -> vector<16x32xf32>
    %63 = arith.truncf %62 : vector<16x32xf32> to vector<16x32xbf16>
    %c0_39 = arith.constant 0 : index
    %c0_40 = arith.constant 0 : index
    %64 = vector.load %arg8[%c0_39, %c0_40] : memref<48x32xbf16, #tpu.memory_space<vmem>>, vector<16x32xbf16>
    tpu.vector_store %arg8[%c0_39, %c0_40], %63 {strides = array<i32>} : memref<48x32xbf16, #tpu.memory_space<vmem>>, vector<16x32xbf16>,
    %c1_41 = arith.constant 1 : index
    %c1_42 = arith.constant 1 : index
    %c0_43 = arith.constant 0 : index
    %c0_44 = arith.constant 0 : index
    %65 = vector.load %arg3[%c1_41, %c1_42, %c0_43, %c0_44] : memref<2x3x128x32xbf16, #tpu.memory_space<vmem>>, vector<1x1x128x32xbf16>
    %66 = vector.shape_cast %65 : vector<1x1x128x32xbf16> to vector<128x32xbf16>
    %cst_45 = arith.constant dense<0.000000e+00> : vector<16x32xf32>
    %67 = tpu.matmul %1, %66, %cst_45 {dimension_numbers = #tpu.dot_dimension_numbers<[1], [0], [0], [1], [0, 0, 1, 1], [], []>} : vector<16x128xbf16>, vector<128x32xbf16>, vector<16x32xf32> -> vector<16x32xf32>
    %68 = arith.truncf %67 : vector<16x32xf32> to vector<16x32xbf16>
    %c16_46 = arith.constant 16 : index
    %c0_47 = arith.constant 0 : index
    %69 = vector.load %arg8[%c16_46, %c0_47] : memref<48x32xbf16, #tpu.memory_space<vmem>>, vector<16x32xbf16>
    tpu.vector_store %arg8[%c16_46, %c0_47], %68 {strides = array<i32>} : memref<48x32xbf16, #tpu.memory_space<vmem>>, vector<16x32xbf16>,
    %c1_48 = arith.constant 1 : index
    %c2_49 = arith.constant 2 : index
    %c0_50 = arith.constant 0 : index
    %c0_51 = arith.constant 0 : index
    %70 = vector.load %arg3[%c1_48, %c2_49, %c0_50, %c0_51] : memref<2x3x128x32xbf16, #tpu.memory_space<vmem>>, vector<1x1x128x32xbf16>
    %71 = vector.shape_cast %70 : vector<1x1x128x32xbf16> to vector<128x32xbf16>
    %cst_52 = arith.constant dense<0.000000e+00> : vector<16x32xf32>
    %72 = tpu.matmul %1, %71, %cst_52 {dimension_numbers = #tpu.dot_dimension_numbers<[1], [0], [0], [1], [0, 0, 1, 1], [], []>} : vector<16x128xbf16>, vector<128x32xbf16>, vector<16x32xf32> -> vector<16x32xf32>
    %73 = arith.truncf %72 : vector<16x32xf32> to vector<16x32xbf16>
    %c32_53 = arith.constant 32 : index
    %c0_54 = arith.constant 0 : index
    %74 = vector.load %arg8[%c32_53, %c0_54] : memref<48x32xbf16, #tpu.memory_space<vmem>>, vector<16x32xbf16>
    tpu.vector_store %arg8[%c32_53, %c0_54], %73 {strides = array<i32>} : memref<48x32xbf16, #tpu.memory_space<vmem>>, vector<16x32xbf16>,
    %c0_55 = arith.constant 0 : index
    %c0_56 = arith.constant 0 : index
    %75 = vector.load %arg8[%c0_55, %c0_56] : memref<48x32xbf16, #tpu.memory_space<vmem>>, vector<48x32xbf16>
    %cst_57 = arith.constant dense<0.000000e+00> : vector<32x32xf32>
    %76 = tpu.matmul %2, %75, %cst_57 {dimension_numbers = #tpu.dot_dimension_numbers<[1], [0], [0], [1], [0, 0, 1, 1], [], []>} : vector<32x48xbf16>, vector<48x32xbf16>, vector<32x32xf32> -> vector<32x32xf32>
    %77 = vector.shape_cast %76 : vector<32x32xf32> to vector<1x32x32xf32>
    %cst_58 = arith.constant dense<0.000000e+00> : vector<1xf32>
    %78 = vector.multi_reduction <add>, %77, %cst_58 [1, 2] : vector<1x32x32xf32> to vector<1xf32>
    %79 = vector.shape_cast %78 : vector<1xf32> to vector<1x1x1xf32>
    %80 = vector.extract %79[0, 0, 0] : f32 from vector<1x1x1xf32>
    %81 = vector.broadcast %80 : f32 to vector<1x1xf32>
    %cst_59 = arith.constant 9.765625E-4 : f32
    %82 = vector.broadcast %cst_59 : f32 to vector<1x1xf32>
    %83 = arith.mulf %81, %82 : vector<1x1xf32>
    %84 = vector.broadcast %83 : vector<1x1xf32> to vector<32x32xf32>
    %85 = arith.subf %76, %84 : vector<32x32xf32>
    %86 = arith.mulf %85, %85 : vector<32x32xf32>
    %87 = vector.shape_cast %86 : vector<32x32xf32> to vector<1x32x32xf32>
    %cst_60 = arith.constant dense<0.000000e+00> : vector<1xf32>
    %88 = vector.multi_reduction <add>, %87, %cst_60 [1, 2] : vector<1x32x32xf32> to vector<1xf32>
    %89 = vector.shape_cast %88 : vector<1xf32> to vector<1x1x1xf32>
    %90 = vector.extract %89[0, 0, 0] : f32 from vector<1x1x1xf32>
    %91 = vector.broadcast %90 : f32 to vector<1x1xf32>
    %cst_61 = arith.constant 9.765625E-4 : f32
    %92 = vector.broadcast %cst_61 : f32 to vector<1x1xf32>
    %93 = arith.mulf %91, %92 : vector<1x1xf32>
    %c2_i32_62 = arith.constant 2 : i32
    %94 = arith.muli %arg0, %c2_i32_62 : i32
    %c1_i32 = arith.constant 1 : i32
    %95 = arith.addi %94, %c1_i32 : i32
    %cst_63 = arith.constant 9.99999974E-6 : f32
    %96 = vector.broadcast %cst_63 : f32 to vector<1x1xf32>
    %97 = arith.addf %93, %96 : vector<1x1xf32>
    %98 = math.rsqrt %97 : vector<1x1xf32>
    %99 = vector.broadcast %98 : vector<1x1xf32> to vector<32x32xf32>
    %100 = arith.mulf %85, %99 : vector<32x32xf32>
    %101 = arith.index_cast %95 : i32 to index
    %102 = memref.load %arg5[%101] : memref<2xf32, #tpu.memory_space<smem>>
    %103 = vector.broadcast %102 : f32 to vector<32x32xf32>
    %104 = arith.mulf %100, %103 : vector<32x32xf32>
    %105 = arith.index_cast %95 : i32 to index
    %106 = memref.load %arg6[%105] : memref<2xf32, #tpu.memory_space<smem>>
    %107 = vector.broadcast %106 : f32 to vector<32x32xf32>
    %108 = arith.addf %104, %107 : vector<32x32xf32>
    %cst_64 = arith.constant 0.000000e+00 : f32
    %109 = vector.broadcast %cst_64 : f32 to vector<32x32xf32>
    %110 = arith.cmpf oge, %108, %109 : vector<32x32xf32>
    %cst_65 = arith.constant 0.00999999977 : f32
    %111 = vector.broadcast %cst_65 : f32 to vector<32x32xf32>
    %112 = arith.mulf %111, %108 : vector<32x32xf32>
    %113 = arith.select %110, %108, %112 : vector<32x32xi1>, vector<32x32xf32>
    %c0_66 = arith.constant 0 : index
    %c1_67 = arith.constant 1 : index
    %c0_68 = arith.constant 0 : index
    %c0_69 = arith.constant 0 : index
    %114 = vector.load %arg7[%c0_66, %c1_67, %c0_68, %c0_69] : memref<1x2x32x32xf32, #tpu.memory_space<vmem>>, vector<1x1x32x32xf32>
    %115 = vector.shape_cast %114 : vector<1x1x32x32xf32> to vector<32x32xf32>
    %116 = vector.shape_cast %113 : vector<32x32xf32> to vector<1x1x32x32xf32>
    tpu.vector_store %arg7[%c0_66, %c1_67, %c0_68, %c0_69], %116 {strides = array<i32>} : memref<1x2x32x32xf32, #tpu.memory_space<vmem>>, vector<1x1x32x32xf32>,
    return
  }
  func.func @transform_0(%arg0: i32, %arg1: i32) -> (i32, i32, i32) {
    %c0_i32 = arith.constant 0 : i32
    %c0_i32_0 = arith.constant 0 : i32
    %c0_i32_1 = arith.constant 0 : i32
    return %arg1, %c0_i32, %c0_i32_0 : i32, i32, i32
  }
  func.func @transform_1(%arg0: i32, %arg1: i32) -> (i32, i32, i32, i32) {
    %c0_i32 = arith.constant 0 : i32
    %c0_i32_0 = arith.constant 0 : i32
    %c0_i32_1 = arith.constant 0 : i32
    %c0_i32_2 = arith.constant 0 : i32
    return %arg0, %c0_i32, %c0_i32_0, %c0_i32_1 : i32, i32, i32, i32
  }
  func.func @transform_2(%arg0: i32, %arg1: i32) -> (i32, i32) {
    %c0_i32 = arith.constant 0 : i32
    %c0_i32_0 = arith.constant 0 : i32
    %c0_i32_1 = arith.constant 0 : i32
    return %c0_i32, %c0_i32_0 : i32, i32
  }
  func.func @transform_3(%arg0: i32, %arg1: i32) -> i32 {
    %c0_i32 = arith.constant 0 : i32
    %c0_i32_0 = arith.constant 0 : i32
    return %c0_i32 : i32
  }
  func.func @transform_4(%arg0: i32, %arg1: i32) -> i32 {
    %c0_i32 = arith.constant 0 : i32
    %c0_i32_0 = arith.constant 0 : i32
    return %c0_i32 : i32
  }
  func.func @transform_5(%arg0: i32, %arg1: i32) -> (i32, i32, i32, i32) {
    %c0_i32 = arith.constant 0 : i32
    %c0_i32_0 = arith.constant 0 : i32
    %c0_i32_1 = arith.constant 0 : i32
    return %arg1, %arg0, %c0_i32, %c0_i32_0 : i32, i32, i32, i32
  }
}

</mosaic_0001>

<llo_original>
// kernel: tpu_custom_call.1
$region0: #{tpu_custom_call.1}
  #allocation0 [shape = 'u32[]', space=smem, size = 0x4, offset = 0x4, fixed_abs, tag = 'smem constant byte address 0x4 - core index']
  #allocation1 [shape = 'u32[144,128]{1,0:T(1,128)}', space=vmem, size = 0x12000, scoped, tag = 'internal scratch']
  #allocation2 [shape = 'bf16[48,32]{1,0:T(16,128)(2,1)}', space=vmem, size = 0x3000, scoped, tag = 'scratch operand']
  %s0 = inlined_call_operand.vmem [shape: bf16[2,16,128], index: 0, kind: input, shape index: {}]
  %s1 = inlined_call_operand.vmem [shape: bf16[2,3,128,32], index: 1, kind: input, shape index: {}]
  %s2 = inlined_call_operand.vmem [shape: bf16[32,48], index: 2, kind: input, shape index: {}]
  %s3 = inlined_call_operand.vmem [shape: f32[2], index: 3, kind: input, shape index: {}]
  %s4 = inlined_call_operand.vmem [shape: f32[2], index: 4, kind: input, shape index: {}]
  %s5 = inlined_call_operand.hbm [shape: f32[2,2,32,32], index: 5, kind: output, shape index: {}]
  %s6 = sld [smem:[#allocation0]]
  $region61: #{tpu_custom_call.1} parent=0
    _
  %s8 = ssub.s32 1, %s6
  %s9 = scalar_select 0, %s8, %s6
  $region1: #{tpu_custom_call.1} parent=0
    #allocation3 [shape = 'u8[512]{0}', space=smem, size = 0x200, scoped, tag = 'input window, operand 3, single buffered']
    #allocation4 [shape = 's32[2]{0}', space=sflag, size = 0x8, scoped, tag = 'scoped memory for tpu_custom_call.1']
    #allocation5 [shape = 's32[2]{0}', space=sflag, size = 0x8, scoped, tag = 'scoped memory for tpu_custom_call.1']
    #allocation6 [shape = 'u8[512]{0}', space=smem, size = 0x200, scoped, tag = 'input window, operand 4, single buffered']
    #allocation7 [shape = 's32[1]{0}', space=sflag, size = 0x4, scoped, tag = 'scoped memory for tpu_custom_call.1']
    #allocation8 [shape = 'u8[65536]{0}', space=vmem, size = 0x10000, scoped, tag = 'output window, operand 0']
    %10 = vsyncpa [#allocation5], 0
    %11 = vsyncpa [#allocation7], 0
    %12 = vsyncpa [#allocation4], 0
    %s13 = scalar_lea.sflag [#allocation4], 1
    %14 = vsyncpa %s13, 0
    loop: start=0, step=1, limit=4
    $region2: #{tpu_custom_call.1} parent=1 // loop_pre_header
      _
    $region3: #{tpu_custom_call.1} parent=1 // loop_header
      %s16 = sphi 0, %s20
      %p17 = scmp.ge.s32.totalorder %s16, 4
      %s23 = sphi 0, %s35
      %s24 = sphi 0, %s31
      %s25 = sphi 0, %s23
      %s26 = sphi 0, %s24
      %s27 = sphi 0, %s25
      %s28 = sphi 0, %s26
      %s38 = sphi 0, %s40
      %s41 = sphi 0, %s38
      %s42 = sphi 0, %s41
      %s58 = sphi 0, %s42
      %s64 = sphi 0, %s66
      %s67 = sphi 0, %s64
      %s68 = sphi 0, %s67
      %s84 = sphi 0, %s68
      %s88 = sphi 0, %s88
      %s90 = sphi 0, %s88
      %s91 = sphi 0, %s90
      %s105 = sphi 0, %s91
      %s109 = sphi 0, %s109
      %s111 = sphi 0, %s109
      %s112 = sphi 0, %s111
      %s126 = sphi 0, %s112
      %s130 = sphi 0, %s130
      %s132 = sphi 0, %s130
      %s133 = sphi 0, %s132
      %s147 = sphi 0, %s133
      %s155 = sphi 0, %s157
      %s158 = sphi 0, %s155
      %s159 = sphi 0, %s158
      %s175 = sphi 0, %s159
    $region4: #{tpu_custom_call.1} parent=1 // loop_header_branch
      %19 = sbr.rel (%p17) target = $region8
    $region5: #{tpu_custom_call.1} parent=1 // loop_body
      %s21 = ssub.s32 %s16, 1
      %s22 = ssub.s32 %s16, 2
      %s29 = sadd.s32 1, %s24
      %p30 = scmp.ge.s32.totalorder %s29, 2
      %s31 = scalar_select %p30, 0, %s29
      %s32 = sadd.s32 1, %s23
      %s33 = scalar_select %p30, %s32, %s23
      %p34 = scmp.ge.s32.totalorder %s33, 1
      %s35 = scalar_select %p34, 0, %s33
      %s36 = ssub.s32 %s24, %s31
      %p37 = scmp.eq.s32.totalorder %s36, 0
      %s39 = sadd.s32 %s38, 1
      %s40 = scalar_select %p37, %s38, %s39
      %p43 = pneg %p37
      %p44 = scmp.eq.s32.totalorder %s16, 1
      %p45 = por %p43, %p44
      %p46 = scmp.ne.s32.totalorder %s38, %s41
      %p47 = scmp.eq.s32.totalorder %s16, 0
      %p48 = por %p46, %p47
      %p49 = scmp.ne.s32.totalorder %s38, %s41
      %p50 = scmp.eq.s32.totalorder %s21, 1
      %p51 = por %p49, %p50
      %p52 = scmp.ne.s32.totalorder %s41, %s42
      %p53 = scmp.eq.s32.totalorder %s21, 0
      %p54 = por %p52, %p53
      %p55 = scmp.ne.s32.totalorder %s41, %s42
      %p56 = scmp.eq.s32.totalorder %s22, 1
      %p57 = por %p55, %p56
      %p59 = scmp.ne.s32.totalorder %s42, %s58
      %p60 = scmp.eq.s32.totalorder %s22, 0
      %p61 = por %p59, %p60
      %s62 = ssub.s32 %s23, %s35
      %p63 = scmp.eq.s32.totalorder %s62, 0
      %s65 = sadd.s32 %s64, 1
      %s66 = scalar_select %p63, %s64, %s65
      %p69 = pneg %p63
      %p70 = scmp.eq.s32.totalorder %s16, 1
      %p71 = por %p69, %p70
      %p72 = scmp.ne.s32.totalorder %s64, %s67
      %p73 = scmp.eq.s32.totalorder %s16, 0
      %p74 = por %p72, %p73
      %p75 = scmp.ne.s32.totalorder %s64, %s67
      %p76 = scmp.eq.s32.totalorder %s21, 1
      %p77 = por %p75, %p76
      %p78 = scmp.ne.s32.totalorder %s67, %s68
      %p79 = scmp.eq.s32.totalorder %s21, 0
      %p80 = por %p78, %p79
      %p81 = scmp.ne.s32.totalorder %s67, %s68
      %p82 = scmp.eq.s32.totalorder %s22, 1
      %p83 = por %p81, %p82
      %p85 = scmp.ne.s32.totalorder %s68, %s84
      %p86 = scmp.eq.s32.totalorder %s22, 0
      %p87 = por %p85, %p86
      %s89 = sadd.s32 %s88, 1
      %p92 = scmp.eq.s32.totalorder %s16, 1
      %p93 = scmp.ne.s32.totalorder %s88, %s90
      %p94 = scmp.eq.s32.totalorder %s16, 0
      %p95 = por %p93, %p94
      %p96 = scmp.ne.s32.totalorder %s88, %s90
      %p97 = scmp.eq.s32.totalorder %s21, 1
      %p98 = por %p96, %p97
      %p99 = scmp.ne.s32.totalorder %s90, %s91
      %p100 = scmp.eq.s32.totalorder %s21, 0
      %p101 = por %p99, %p100
      %p102 = scmp.ne.s32.totalorder %s90, %s91
      %p103 = scmp.eq.s32.totalorder %s22, 1
      %p104 = por %p102, %p103
      %p106 = scmp.ne.s32.totalorder %s91, %s105
      %p107 = scmp.eq.s32.totalorder %s22, 0
      %p108 = por %p106, %p107
      %s110 = sadd.s32 %s109, 1
      %p113 = scmp.eq.s32.totalorder %s16, 1
      %p114 = scmp.ne.s32.totalorder %s109, %s111
      %p115 = scmp.eq.s32.totalorder %s16, 0
      %p116 = por %p114, %p115
      %p117 = scmp.ne.s32.totalorder %s109, %s111
      %p118 = scmp.eq.s32.totalorder %s21, 1
      %p119 = por %p117, %p118
      %p120 = scmp.ne.s32.totalorder %s111, %s112
      %p121 = scmp.eq.s32.totalorder %s21, 0
      %p122 = por %p120, %p121
      %p123 = scmp.ne.s32.totalorder %s111, %s112
      %p124 = scmp.eq.s32.totalorder %s22, 1
      %p125 = por %p123, %p124
      %p127 = scmp.ne.s32.totalorder %s112, %s126
      %p128 = scmp.eq.s32.totalorder %s22, 0
      %p129 = por %p127, %p128
      %s131 = sadd.s32 %s130, 1
      %p134 = scmp.eq.s32.totalorder %s16, 1
      %p135 = scmp.ne.s32.totalorder %s130, %s132
      %p136 = scmp.eq.s32.totalorder %s16, 0
      %p137 = por %p135, %p136
      %p138 = scmp.ne.s32.totalorder %s130, %s132
      %p139 = scmp.eq.s32.totalorder %s21, 1
      %p140 = por %p138, %p139
      %p141 = scmp.ne.s32.totalorder %s132, %s133
      %p142 = scmp.eq.s32.totalorder %s21, 0
      %p143 = por %p141, %p142
      %p144 = scmp.ne.s32.totalorder %s132, %s133
      %p145 = scmp.eq.s32.totalorder %s22, 1
      %p146 = por %p144, %p145
      %p148 = scmp.ne.s32.totalorder %s133, %s147
      %p149 = scmp.eq.s32.totalorder %s22, 0
      %p150 = por %p148, %p149
      %s151 = ssub.s32 %s24, %s31
      %s152 = ssub.s32 %s23, %s35
      %s153 = sor.u32 %s151, %s152
      %p154 = scmp.eq.s32.totalorder %s153, 0
      %s156 = sadd.s32 %s155, 1
      %s157 = scalar_select %p154, %s155, %s156
      %p160 = pneg %p154
      %p161 = scmp.eq.s32.totalorder %s16, 1
      %p162 = por %p160, %p161
      %p163 = scmp.ne.s32.totalorder %s155, %s158
      %p164 = scmp.eq.s32.totalorder %s16, 0
      %p165 = por %p163, %p164
      %p166 = scmp.ne.s32.totalorder %s155, %s158
      %p167 = scmp.eq.s32.totalorder %s21, 1
      %p168 = por %p166, %p167
      %p169 = scmp.ne.s32.totalorder %s158, %s159
      %p170 = scmp.eq.s32.totalorder %s21, 0
      %p171 = por %p169, %p170
      %p172 = scmp.ne.s32.totalorder %s158, %s159
      %p173 = scmp.eq.s32.totalorder %s22, 1
      %p174 = por %p172, %p173
      %p176 = scmp.ne.s32.totalorder %s159, %s175
      %p177 = scmp.eq.s32.totalorder %s22, 0
      %p178 = por %p176, %p177
      %p179 = scmp.le.s32.totalorder 1, %s16
      %p180 = scmp.lt.s32.totalorder %s16, 3
      %p181 = pnand %p179, %p180
      %p182 = pneg %p181
      // Predicated region
      $region9: #{tpu_custom_call.1} parent=5 // pred_check
        _
      $region10: #{tpu_custom_call.1} parent=5 // pred_check_branch
        %184 = sbr.rel (%p181) target = $region12
      $region11: #{tpu_custom_call.1} parent=5 // pred_region
        %s185 = ssub.s32 %s16, 1
        // Predicated region
        $region13: #{tpu_custom_call.1} parent=11 // pred_check
          %p186 = pneg %p80
        $region14: #{tpu_custom_call.1} parent=11 // pred_check_branch
          %188 = sbr.rel (%p186) target = $region16
        $region15: #{tpu_custom_call.1} parent=11 // pred_region
          %s189 = smul.u32 2, %s25
          %p190 = scmp.lt.s32.totalorder %s189, 1
          %s191 = scalar_select %p190, %s189, 1
          %s192 = smul.addr %s191, 48
          %s193 = smul.addr %s192, 4
          %s194 = scalar_lea.vmem %s1, %s193
          %s195 = smul.u32 2, %s25
        $region16: #{tpu_custom_call.1} parent=11 // pred_fallthru
          _
        // Predicated region
        $region17: #{tpu_custom_call.1} parent=11 // pred_check
          %p196 = pneg %p101
        $region18: #{tpu_custom_call.1} parent=11 // pred_check_branch
          %198 = sbr.rel (%p196) target = $region20
        $region19: #{tpu_custom_call.1} parent=11 // pred_region
          _
        $region20: #{tpu_custom_call.1} parent=11 // pred_fallthru
          _
        // Predicated region
        $region21: #{tpu_custom_call.1} parent=11 // pred_check
          %p199 = pneg %p122
        $region22: #{tpu_custom_call.1} parent=11 // pred_check_branch
          %201 = sbr.rel (%p199) target = $region24
        $region23: #{tpu_custom_call.1} parent=11 // pred_region
          %s203 = ssub.s32 16, 16
          %204 = vsyncadd [#allocation5], %s203
          %s206 = sshll.u32 %s3, 4
          %s207 = int_to_ptr.vmem [resolvable:$true] %s206
          %209 = dma.vmem_to_smem %s207, 16, [#allocation3], [#allocation5]
        $region24: #{tpu_custom_call.1} parent=11 // pred_fallthru
          _
        // Predicated region
        $region25: #{tpu_custom_call.1} parent=11 // pred_check
          %p210 = pneg %p143
        $region26: #{tpu_custom_call.1} parent=11 // pred_check_branch
          %212 = sbr.rel (%p210) target = $region28
        $region27: #{tpu_custom_call.1} parent=11 // pred_region
          %s214 = ssub.s32 16, 16
          %215 = vsyncadd [#allocation7], %s214
          %s217 = sshll.u32 %s4, 4
          %s218 = int_to_ptr.vmem [resolvable:$true] %s217
          %220 = dma.vmem_to_smem %s218, 16, [#allocation6], [#allocation7]
        $region28: #{tpu_custom_call.1} parent=11 // pred_fallthru
          _
      $region12: #{tpu_custom_call.1} parent=5 // pred_fallthru
        _
      %p221 = scmp.lt.s32.totalorder %s16, 2
      // Predicated region
      $region29: #{tpu_custom_call.1} parent=5 // pred_check
        %p222 = pneg %p221
      $region30: #{tpu_custom_call.1} parent=5 // pred_check_branch
        %224 = sbr.rel (%p222) target = $region32
      $region31: #{tpu_custom_call.1} parent=5 // pred_region
        // Predicated region
        $region33: #{tpu_custom_call.1} parent=31 // pred_check
          %p225 = pneg %p48
        $region34: #{tpu_custom_call.1} parent=31 // pred_check_branch
          %227 = sbr.rel (%p225) target = $region36
        $region35: #{tpu_custom_call.1} parent=31 // pred_region
          %p228 = scmp.lt.s32.totalorder %s24, 1
          %s229 = scalar_select %p228, %s24, 1
          %s230 = smul.addr %s229, 2
          %s231 = smul.addr %s230, 4
          %s232 = scalar_lea.vmem %s0, %s231
        $region36: #{tpu_custom_call.1} parent=31 // pred_fallthru
          _
      $region32: #{tpu_custom_call.1} parent=5 // pred_fallthru
        _
      %p233 = scmp.le.s32.totalorder 1, %s16
      %p234 = scmp.lt.s32.totalorder %s16, 3
      %p235 = pnand %p233, %p234
      %p236 = pneg %p235
      // Predicated region
      $region37: #{tpu_custom_call.1} parent=5 // pred_check
        _
      $region38: #{tpu_custom_call.1} parent=5 // pred_check_branch
        %238 = sbr.rel (%p235) target = $region40
      $region39: #{tpu_custom_call.1} parent=5 // pred_region
        %s239 = ssub.s32 %s16, 1
        // Predicated region
        $region41: #{tpu_custom_call.1} parent=39 // pred_check
          %p240 = pneg %p122
        $region42: #{tpu_custom_call.1} parent=39 // pred_check_branch
          %242 = sbr.rel (%p240) target = $region44
        $region43: #{tpu_custom_call.1} parent=39 // pred_region
          %243 = dma.done [#allocation5], 16
        $region44: #{tpu_custom_call.1} parent=39 // pred_fallthru
          _
        // Predicated region
        $region45: #{tpu_custom_call.1} parent=39 // pred_check
          %p244 = pneg %p143
        $region46: #{tpu_custom_call.1} parent=39 // pred_check_branch
          %246 = sbr.rel (%p244) target = $region48
        $region47: #{tpu_custom_call.1} parent=39 // pred_region
          %247 = dma.done [#allocation7], 16
        $region48: #{tpu_custom_call.1} parent=39 // pred_fallthru
          _
        %248 = sfence
        %p249 = scmp.lt.s32.totalorder %s26, 1
        %s250 = scalar_select %p249, %s26, 1
        %s251 = smul.addr %s250, 2
        %s252 = smul.addr %s251, 4
        %s253 = scalar_lea.vmem %s0, %s252
        %p254 = pneg %p54
        %p255 = pneg %p51
        %s256 = smul.u32 2, %s25
        %p257 = scmp.lt.s32.totalorder %s256, 1
        %s258 = scalar_select %p257, %s256, 1
        %s259 = smul.addr %s258, 48
        %s260 = smul.addr %s259, 4
        %s261 = scalar_lea.vmem %s1, %s260
        %p262 = pneg %p80
        %p263 = pneg %p77
        %p264 = pneg %p101
        %p265 = pneg %p98
        %p266 = pneg %p122
        %p267 = pneg %p119
        %p268 = pneg %p143
        %p269 = pneg %p140
        %p270 = pneg %p171
        %p271 = pneg %p168
        %s272 = sand.u32 %s158, 1
        %s273 = scalar_lea.sflag [#allocation4], %s272
        %s274 = sand.u32 %s158, 1
        %s275 = smul.addr %s274, 64
        %s276 = scalar_lea.vmem [#allocation8], %s275
        %p277 = scmp.lt.s32.totalorder %s26, 1
        %s278 = scalar_select %p277, %s26, 1
        %s279 = smul.addr %s278, 2
        %s280 = smul.addr %s279, 4
        %s281 = scalar_lea.vmem %s0, %s280
        %s282 = smul.u32 2, %s25
        %p283 = scmp.lt.s32.totalorder %s282, 1
        %s284 = scalar_select %p283, %s282, 1
        %s285 = smul.addr %s284, 48
        %s286 = smul.addr %s285, 4
        %s287 = scalar_lea.vmem %s1, %s286
        %s288 = smul.u32 2, %s25
        %s289 = smul.u32 2, %s25
        %v291 = vld [vmem:[%s281] sm:$0xf]
        %v292 = vld [vmem:[%s281 + $0x4] sm:$0xf]
        %v293 = vld [vmem:[%s2] sm:$0xf]
        %v294 = vld [vmem:[%s2 + $0x4] sm:$0xf]
        %v295 = vld [vmem:[%s2 + $0x8] sm:$0xf]
        %v296 = vld [vmem:[%s2 + $0xc] sm:$0xf]
        %v297 = vld [vmem:[%s287] sm:$0xf]
        %v298 = vld [vmem:[%s287 + $0x4] sm:$0xf]
        %v299 = vld [vmem:[%s287 + $0x8] sm:$0xf]
        %v300 = vld [vmem:[%s287 + $0xc] sm:$0xf]
        %v301 = vld [vmem:[%s287 + $0x10] sm:$0xf]
        %v302 = vld [vmem:[%s287 + $0x14] sm:$0xf]
        %v303 = vld [vmem:[%s287 + $0x18] sm:$0xf]
        %v304 = vld [vmem:[%s287 + $0x1c] sm:$0xf]
        %v305 = vld [vmem:[%s287 + $0x20] sm:$0xf]
        %v306 = vld [vmem:[%s287 + $0x24] sm:$0xf]
        %v307 = vld [vmem:[%s287 + $0x28] sm:$0xf]
        %v308 = vld [vmem:[%s287 + $0x2c] sm:$0xf]
        %v309 = vld [vmem:[%s287 + $0x30] sm:$0xf]
        %v310 = vld [vmem:[%s287 + $0x34] sm:$0xf]
        %v311 = vld [vmem:[%s287 + $0x38] sm:$0xf]
        %v312 = vld [vmem:[%s287 + $0x3c] sm:$0xf]
        %v315 = vunpack.c.l.b16 %v291
        %v316 = vunpack.c.l.b16 %v292
        %v317 = vpack.c.b16 %v316, %v315
        %v335 = vunpack.c.l.b16 %v297
        %v336 = vunpack.c.l.b16 %v298
        %v337 = vunpack.c.l.b16 %v299
        %v338 = vunpack.c.l.b16 %v300
        %v339 = vunpack.c.l.b16 %v301
        %v340 = vunpack.c.l.b16 %v302
        %v341 = vunpack.c.l.b16 %v303
        %v342 = vunpack.c.l.b16 %v304
        %v343 = vunpack.c.l.b16 %v305
        %v344 = vunpack.c.l.b16 %v306
        %v345 = vunpack.c.l.b16 %v307
        %v346 = vunpack.c.l.b16 %v308
        %v347 = vunpack.c.l.b16 %v309
        %v348 = vunpack.c.l.b16 %v310
        %v349 = vunpack.c.l.b16 %v311
        %v350 = vunpack.c.l.b16 %v312
        %v351 = vpack.c.b16 %v336, %v335
        %v352 = vpack.c.b16 %v338, %v337
        %v353 = vpack.c.b16 %v340, %v339
        %v354 = vpack.c.b16 %v342, %v341
        %v355 = vpack.c.b16 %v344, %v343
        %v356 = vpack.c.b16 %v346, %v345
        %v357 = vpack.c.b16 %v348, %v347
        %v358 = vpack.c.b16 %v350, %v349
        %367 = vmatprep.subr.bf16.mxu0 0
        %368 = vmatpush1.bf16.msra.mxu0 %v351
        %369 = vmatprep.subr.bf16.mxu0 0
        %370 = vmatpush1.bf16.msra.mxu0 %v352
        %371 = vmatprep.subr.bf16.mxu0 0
        %372 = vmatpush1.bf16.msra.mxu0 %v353
        %373 = vmatprep.subr.bf16.mxu0 0
        %374 = vmatpush1.bf16.msra.mxu0 %v354
        %375 = vmatprep.subr.bf16.mxu0 0
        %376 = vmatpush1.bf16.msra.mxu0 %v355
        %377 = vmatprep.subr.bf16.mxu0 0
        %378 = vmatpush1.bf16.msra.mxu0 %v356
        %379 = vmatprep.subr.bf16.mxu0 0
        %380 = vmatpush1.bf16.msra.mxu0 %v357
        %381 = vmatprep.subr.bf16.mxu0 0
        %382 = vmatpush1.bf16.msra.mxu0 %v358
        %383 = vmatprep.subr.bf16.mxu0 0
        %384 = vmatpush1.bf16.msra.mxu0 0
        %385 = vmatprep.subr.bf16.mxu0 0
        %386 = vmatpush1.bf16.msra.mxu0 0
        %387 = vmatprep.subr.bf16.mxu0 0
        %388 = vmatpush1.bf16.msra.mxu0 0
        %389 = vmatprep.subr.bf16.mxu0 0
        %390 = vmatpush1.bf16.msra.mxu0 0
        %391 = vmatprep.subr.bf16.mxu0 0
        %392 = vmatpush1.bf16.msra.mxu0 0
        %393 = vmatprep.subr.bf16.mxu0 0
        %394 = vmatpush1.bf16.msra.mxu0 0
        %395 = vmatprep.subr.bf16.mxu0 0
        %396 = vmatpush1.bf16.msra.mxu0 0
        %397 = vmatprep.subr.bf16.mxu0 0
        %398 = vmatpush1.bf16.msra.mxu0 0
        %399 = vmatprep.mubr.bf16.mxu0 0
        %400 = vmatmul.mubr.bf16.gmra.mrb[0].mxu0 %v317
        %v401 = vpop.f32.mrb[0].mxu0
        %v402 = vadd.f32 0.0, %v401
        %v403 = vpop.f32.mrb[0].mxu0
        %v404 = vpop.f32.mrb[0].mxu0
        %v405 = vadd.f32 0.0, %v404
        %v406 = vpop.f32.mrb[0].mxu0
        %407 = vdwg.mxu0
        %v408 = vpack.c.bf16 %v405, %v402
        %vm409 = vcmask 261120
        %410 = vst.msk [vmem:[#allocation2] sm:$0xff] %vm409, %v408
        %s411 = scalar_lea.vmem %s287, 64
        %v412 = vld [vmem:[%s411] sm:$0xf]
        %v413 = vld [vmem:[%s411 + $0x4] sm:$0xf]
        %v414 = vld [vmem:[%s411 + $0x8] sm:$0xf]
        %v415 = vld [vmem:[%s411 + $0xc] sm:$0xf]
        %v416 = vld [vmem:[%s411 + $0x10] sm:$0xf]
        %v417 = vld [vmem:[%s411 + $0x14] sm:$0xf]
        %v418 = vld [vmem:[%s411 + $0x18] sm:$0xf]
        %v419 = vld [vmem:[%s411 + $0x1c] sm:$0xf]
        %v420 = vld [vmem:[%s411 + $0x20] sm:$0xf]
        %v421 = vld [vmem:[%s411 + $0x24] sm:$0xf]
        %v422 = vld [vmem:[%s411 + $0x28] sm:$0xf]
        %v423 = vld [vmem:[%s411 + $0x2c] sm:$0xf]
        %v424 = vld [vmem:[%s411 + $0x30] sm:$0xf]
        %v425 = vld [vmem:[%s411 + $0x34] sm:$0xf]
        %v426 = vld [vmem:[%s411 + $0x38] sm:$0xf]
        %v427 = vld [vmem:[%s411 + $0x3c] sm:$0xf]
        %v444 = vunpack.c.l.b16 %v412
        %v445 = vunpack.c.l.b16 %v413
        %v446 = vunpack.c.l.b16 %v414
        %v447 = vunpack.c.l.b16 %v415
        %v448 = vunpack.c.l.b16 %v416
        %v449 = vunpack.c.l.b16 %v417
        %v450 = vunpack.c.l.b16 %v418
        %v451 = vunpack.c.l.b16 %v419
        %v452 = vunpack.c.l.b16 %v420
        %v453 = vunpack.c.l.b16 %v421
        %v454 = vunpack.c.l.b16 %v422
        %v455 = vunpack.c.l.b16 %v423
        %v456 = vunpack.c.l.b16 %v424
        %v457 = vunpack.c.l.b16 %v425
        %v458 = vunpack.c.l.b16 %v426
        %v459 = vunpack.c.l.b16 %v427
        %v460 = vpack.c.b16 %v445, %v444
        %v461 = vpack.c.b16 %v447, %v446
        %v462 = vpack.c.b16 %v449, %v448
        %v463 = vpack.c.b16 %v451, %v450
        %v464 = vpack.c.b16 %v453, %v452
        %v465 = vpack.c.b16 %v455, %v454
        %v466 = vpack.c.b16 %v457, %v456
        %v467 = vpack.c.b16 %v459, %v458
        %476 = vmatprep.subr.bf16.mxu0 0
        %477 = vmatpush1.bf16.msra.mxu0 %v460
        %478 = vmatprep.subr.bf16.mxu0 0
        %479 = vmatpush1.bf16.msra.mxu0 %v461
        %480 = vmatprep.subr.bf16.mxu0 0
        %481 = vmatpush1.bf16.msra.mxu0 %v462
        %482 = vmatprep.subr.bf16.mxu0 0
        %483 = vmatpush1.bf16.msra.mxu0 %v463
        %484 = vmatprep.subr.bf16.mxu0 0
        %485 = vmatpush1.bf16.msra.mxu0 %v464
        %486 = vmatprep.subr.bf16.mxu0 0
        %487 = vmatpush1.bf16.msra.mxu0 %v465
        %488 = vmatprep.subr.bf16.mxu0 0
        %489 = vmatpush1.bf16.msra.mxu0 %v466
        %490 = vmatprep.subr.bf16.mxu0 0
        %491 = vmatpush1.bf16.msra.mxu0 %v467
        %492 = vmatprep.subr.bf16.mxu0 0
        %493 = vmatpush1.bf16.msra.mxu0 0
        %494 = vmatprep.subr.bf16.mxu0 0
        %495 = vmatpush1.bf16.msra.mxu0 0
        %496 = vmatprep.subr.bf16.mxu0 0
        %497 = vmatpush1.bf16.msra.mxu0 0
        %498 = vmatprep.subr.bf16.mxu0 0
        %499 = vmatpush1.bf16.msra.mxu0 0
        %500 = vmatprep.subr.bf16.mxu0 0
        %501 = vmatpush1.bf16.msra.mxu0 0
        %502 = vmatprep.subr.bf16.mxu0 0
        %503 = vmatpush1.bf16.msra.mxu0 0
        %504 = vmatprep.subr.bf16.mxu0 0
        %505 = vmatpush1.bf16.msra.mxu0 0
        %506 = vmatprep.subr.bf16.mxu0 0
        %507 = vmatpush1.bf16.msra.mxu0 0
        %508 = vmatprep.mubr.bf16.mxu0 0
        %509 = vmatmul.mubr.bf16.gmra.mrb[0].mxu0 %v317
        %v510 = vpop.f32.mrb[0].mxu0
        %v511 = vadd.f32 0.0, %v510
        %v512 = vpop.f32.mrb[0].mxu0
        %v513 = vpop.f32.mrb[0].mxu0
        %v514 = vadd.f32 0.0, %v513
        %v515 = vpop.f32.mrb[0].mxu0
        %516 = vdwg.mxu0
        %v517 = vpack.c.bf16 %v514, %v511
        %518 = vst.msk [vmem:[#allocation2 + $0x8] sm:$0xff] %vm409, %v517
        %s519 = scalar_lea.vmem %s287, 128
        %v520 = vld [vmem:[%s519] sm:$0xf]
        %v521 = vld [vmem:[%s519 + $0x4] sm:$0xf]
        %v522 = vld [vmem:[%s519 + $0x8] sm:$0xf]
        %v523 = vld [vmem:[%s519 + $0xc] sm:$0xf]
        %v524 = vld [vmem:[%s519 + $0x10] sm:$0xf]
        %v525 = vld [vmem:[%s519 + $0x14] sm:$0xf]
        %v526 = vld [vmem:[%s519 + $0x18] sm:$0xf]
        %v527 = vld [vmem:[%s519 + $0x1c] sm:$0xf]
        %v528 = vld [vmem:[%s519 + $0x20] sm:$0xf]
        %v529 = vld [vmem:[%s519 + $0x24] sm:$0xf]
        %v530 = vld [vmem:[%s519 + $0x28] sm:$0xf]
        %v531 = vld [vmem:[%s519 + $0x2c] sm:$0xf]
        %v532 = vld [vmem:[%s519 + $0x30] sm:$0xf]
        %v533 = vld [vmem:[%s519 + $0x34] sm:$0xf]
        %v534 = vld [vmem:[%s519 + $0x38] sm:$0xf]
        %v535 = vld [vmem:[%s519 + $0x3c] sm:$0xf]
        %v552 = vunpack.c.l.b16 %v520
        %v553 = vunpack.c.l.b16 %v521
        %v554 = vunpack.c.l.b16 %v522
        %v555 = vunpack.c.l.b16 %v523
        %v556 = vunpack.c.l.b16 %v524
        %v557 = vunpack.c.l.b16 %v525
        %v558 = vunpack.c.l.b16 %v526
        %v559 = vunpack.c.l.b16 %v527
        %v560 = vunpack.c.l.b16 %v528
        %v561 = vunpack.c.l.b16 %v529
        %v562 = vunpack.c.l.b16 %v530
        %v563 = vunpack.c.l.b16 %v531
        %v564 = vunpack.c.l.b16 %v532
        %v565 = vunpack.c.l.b16 %v533
        %v566 = vunpack.c.l.b16 %v534
        %v567 = vunpack.c.l.b16 %v535
        %v568 = vpack.c.b16 %v553, %v552
        %v569 = vpack.c.b16 %v555, %v554
        %v570 = vpack.c.b16 %v557, %v556
        %v571 = vpack.c.b16 %v559, %v558
        %v572 = vpack.c.b16 %v561, %v560
        %v573 = vpack.c.b16 %v563, %v562
        %v574 = vpack.c.b16 %v565, %v564
        %v575 = vpack.c.b16 %v567, %v566
        %584 = vmatprep.subr.bf16.mxu0 0
        %585 = vmatpush1.bf16.msra.mxu0 %v568
        %586 = vmatprep.subr.bf16.mxu0 0
        %587 = vmatpush1.bf16.msra.mxu0 %v569
        %588 = vmatprep.subr.bf16.mxu0 0
        %589 = vmatpush1.bf16.msra.mxu0 %v570
        %590 = vmatprep.subr.bf16.mxu0 0
        %591 = vmatpush1.bf16.msra.mxu0 %v571
        %592 = vmatprep.subr.bf16.mxu0 0
        %593 = vmatpush1.bf16.msra.mxu0 %v572
        %594 = vmatprep.subr.bf16.mxu0 0
        %595 = vmatpush1.bf16.msra.mxu0 %v573
        %596 = vmatprep.subr.bf16.mxu0 0
        %597 = vmatpush1.bf16.msra.mxu0 %v574
        %598 = vmatprep.subr.bf16.mxu0 0
        %599 = vmatpush1.bf16.msra.mxu0 %v575
        %600 = vmatprep.subr.bf16.mxu0 0
        %601 = vmatpush1.bf16.msra.mxu0 0
        %602 = vmatprep.subr.bf16.mxu0 0
        %603 = vmatpush1.bf16.msra.mxu0 0
        %604 = vmatprep.subr.bf16.mxu0 0
        %605 = vmatpush1.bf16.msra.mxu0 0
        %606 = vmatprep.subr.bf16.mxu0 0
        %607 = vmatpush1.bf16.msra.mxu0 0
        %608 = vmatprep.subr.bf16.mxu0 0
        %609 = vmatpush1.bf16.msra.mxu0 0
        %610 = vmatprep.subr.bf16.mxu0 0
        %611 = vmatpush1.bf16.msra.mxu0 0
        %612 = vmatprep.subr.bf16.mxu0 0
        %613 = vmatpush1.bf16.msra.mxu0 0
        %614 = vmatprep.subr.bf16.mxu0 0
        %615 = vmatpush1.bf16.msra.mxu0 0
        %616 = vmatprep.mubr.bf16.mxu0 0
        %617 = vmatmul.mubr.bf16.gmra.mrb[0].mxu0 %v317
        %v618 = vpop.f32.mrb[0].mxu0
        %v619 = vadd.f32 0.0, %v618
        %v620 = vpop.f32.mrb[0].mxu0
        %v621 = vpop.f32.mrb[0].mxu0
        %v622 = vadd.f32 0.0, %v621
        %v623 = vpop.f32.mrb[0].mxu0
        %624 = vdwg.mxu0
        %v625 = vpack.c.bf16 %v622, %v619
        %626 = vst.msk [vmem:[#allocation2 + $0x10] sm:$0xff] %vm409, %v625
        %v627 = vld [vmem:[#allocation2] sm:$0xff]
        %v628 = vld [vmem:[#allocation2 + $0x8] sm:$0xff]
        %v629 = vld [vmem:[#allocation2 + $0x10] sm:$0xff]
        %v634 = vunpack.c.l.b16 %v293
        %v635 = vunpack.c.l.b16 %v294
        %v636 = vunpack.c.l.b16 %v295
        %v637 = vunpack.c.l.b16 %v296
        %v638 = vpack.c.b16 %v635, %v634
        %v639 = vpack.c.b16 %v637, %v636
        %vm640 = vcmask 392192
        %v642 = vsel %vm640, %v638, 0
        %v645 = vsel %vm640, %v639, 0
        %647 = vmatprep.subr.bf16.mxu0 0
        %648 = vmatpush1.bf16.msra.mxu0 %v627
        %649 = vmatprep.subr.bf16.mxu0 0
        %650 = vmatpush1.bf16.msra.mxu0 %v628
        %651 = vmatprep.subr.bf16.mxu0 0
        %652 = vmatpush1.bf16.msra.mxu0 %v629
        %653 = vmatprep.subr.bf16.mxu0 0
        %654 = vmatpush1.bf16.msra.mxu0 0
        %655 = vmatprep.subr.bf16.mxu0 0
        %656 = vmatpush1.bf16.msra.mxu0 0
        %657 = vmatprep.subr.bf16.mxu0 0
        %658 = vmatpush1.bf16.msra.mxu0 0
        %659 = vmatprep.subr.bf16.mxu0 0
        %660 = vmatpush1.bf16.msra.mxu0 0
        %661 = vmatprep.subr.bf16.mxu0 0
        %662 = vmatpush1.bf16.msra.mxu0 0
        %663 = vmatprep.subr.bf16.mxu0 0
        %664 = vmatpush1.bf16.msra.mxu0 0
        %665 = vmatprep.subr.bf16.mxu0 0
        %666 = vmatpush1.bf16.msra.mxu0 0
        %667 = vmatprep.subr.bf16.mxu0 0
        %668 = vmatpush1.bf16.msra.mxu0 0
        %669 = vmatprep.subr.bf16.mxu0 0
        %670 = vmatpush1.bf16.msra.mxu0 0
        %671 = vmatprep.subr.bf16.mxu0 0
        %672 = vmatpush1.bf16.msra.mxu0 0
        %673 = vmatprep.subr.bf16.mxu0 0
        %674 = vmatpush1.bf16.msra.mxu0 0
        %675 = vmatprep.subr.bf16.mxu0 0
        %676 = vmatpush1.bf16.msra.mxu0 0
        %677 = vmatprep.subr.bf16.mxu0 0
        %678 = vmatpush1.bf16.msra.mxu0 0
        %679 = vmatprep.mubr.bf16.mxu0 0
        %680 = vmatmul.mubr.bf16.gmra.mrb[0].mxu0 %v642
        %v681 = vpop.f32.mrb[0].mxu0
        %v682 = vadd.f32 0.0, %v681
        %v683 = vpop.f32.mrb[0].mxu0
        %v684 = vpop.f32.mrb[0].mxu0
        %v685 = vadd.f32 0.0, %v684
        %v686 = vpop.f32.mrb[0].mxu0
        %687 = vmatprep.mubr.bf16.mxu0 0
        %688 = vmatmul.mubr.bf16.gmra.mrb[0].mxu0 %v645
        %v689 = vpop.f32.mrb[0].mxu0
        %v690 = vadd.f32 0.0, %v689
        %v691 = vpop.f32.mrb[0].mxu0
        %v692 = vpop.f32.mrb[0].mxu0
        %v693 = vadd.f32 0.0, %v692
        %v694 = vpop.f32.mrb[0].mxu0
        %695 = vdwg.mxu0
        %v696 = vsel %vm409, %v682, 0.0
        %v697 = vsel %vm409, %v685, 0.0
        %v698 = vadd.f32 %v696, %v697
        %v699 = vsel %vm409, %v690, 0.0
        %v700 = vadd.f32 %v698, %v699
        %v701 = vsel %vm409, %v693, 0.0
        %v702 = vadd.f32 %v700, %v701
        %703 = vadd.xlane.f32.xlu0 %v702
        %v704 = vpop.xlane.xlu0 %703
        %v705 = vrot.slane %v704, 4
        %v706 = vadd.f32 %v704, %v705
        %v707 = vrot.slane %v706, 2
        %v708 = vadd.f32 %v706, %v707
        %v709 = vrot.slane %v708, 1
        %v710 = vadd.f32 %v708, %v709
        %s711 = vtos %v710
        %v712 = vstv %s711
        %v713 = vmul.f32 %v712, 0.0009765625
        %v714 = vsub.f32 %v682, %v713
        %v715 = vsub.f32 %v685, %v713
        %v716 = vsub.f32 %v690, %v713
        %v717 = vsub.f32 %v693, %v713
        %v718 = vmul.f32 %v714, %v714
        %v719 = vmul.f32 %v715, %v715
        %v720 = vmul.f32 %v716, %v716
        %v721 = vmul.f32 %v717, %v717
        %v722 = vsel %vm409, %v718, 0.0
        %v723 = vsel %vm409, %v719, 0.0
        %v724 = vadd.f32 %v722, %v723
        %v725 = vsel %vm409, %v720, 0.0
        %v726 = vadd.f32 %v724, %v725
        %v727 = vsel %vm409, %v721, 0.0
        %v728 = vadd.f32 %v726, %v727
        %729 = vadd.xlane.f32.xlu0 %v728
        %v730 = vpop.xlane.xlu0 %729
        %v731 = vrot.slane %v730, 4
        %v732 = vadd.f32 %v730, %v731
        %v733 = vrot.slane %v732, 2
        %v734 = vadd.f32 %v732, %v733
        %v735 = vrot.slane %v734, 1
        %v736 = vadd.f32 %v734, %v735
        %s737 = vtos %v736
        %v738 = vstv %s737
        %v739 = vmul.f32 %v738, 0.0009765625
        %s740 = smul.u32 %s25, 2
        %v741 = vadd.f32 %v739, 1e-05
        %v742 = vrsqrt.pop %v741
        %v743 = vmul.f32 %v714, %v742
        %v744 = vmul.f32 %v715, %v742
        %v745 = vmul.f32 %v716, %v742
        %v746 = vmul.f32 %v717, %v742
        %s747 = sld [smem:[#allocation3 + %s740]]
        %v748 = vstv %s747
        %v749 = vmul.f32 %v743, %v748
        %v750 = vmul.f32 %v744, %v748
        %v751 = vmul.f32 %v745, %v748
        %v752 = vmul.f32 %v746, %v748
        %s753 = sld [smem:[#allocation6 + %s740]]
        %v754 = vstv %s753
        %v755 = vadd.f32 %v749, %v754
        %v756 = vadd.f32 %v750, %v754
        %v757 = vadd.f32 %v751, %v754
        %v758 = vadd.f32 %v752, %v754
        %vm759 = vcmp.ge.f32.partialorder %v755, 0.0
        %vm760 = vcmp.ge.f32.partialorder %v756, 0.0
        %vm761 = vcmp.ge.f32.partialorder %v757, 0.0
        %vm762 = vcmp.ge.f32.partialorder %v758, 0.0
        %v763 = vmul.f32 %v755, 0.01
        %v764 = vmul.f32 %v756, 0.01
        %v765 = vmul.f32 %v757, 0.01
        %v766 = vmul.f32 %v758, 0.01
        %v767 = vsel %vm759, %v755, %v763
        %v768 = vsel %vm760, %v756, %v764
        %v769 = vsel %vm761, %v757, %v765
        %v770 = vsel %vm762, %v758, %v766
        %771 = vst.msk [vmem:[%s276] sm:$0xff] %vm409, %v767
        %772 = vst.msk [vmem:[%s276 + $0x8] sm:$0xff] %vm409, %v768
        %773 = vst.msk [vmem:[%s276 + $0x10] sm:$0xff] %vm409, %v769
        %774 = vst.msk [vmem:[%s276 + $0x18] sm:$0xff] %vm409, %v770
        %s775 = scalar_lea.vmem %s287, 192
        %v776 = vld [vmem:[%s775] sm:$0xf]
        %v777 = vld [vmem:[%s775 + $0x4] sm:$0xf]
        %v778 = vld [vmem:[%s775 + $0x8] sm:$0xf]
        %v779 = vld [vmem:[%s775 + $0xc] sm:$0xf]
        %v780 = vld [vmem:[%s775 + $0x10] sm:$0xf]
        %v781 = vld [vmem:[%s775 + $0x14] sm:$0xf]
        %v782 = vld [vmem:[%s775 + $0x18] sm:$0xf]
        %v783 = vld [vmem:[%s775 + $0x1c] sm:$0xf]
        %v784 = vld [vmem:[%s775 + $0x20] sm:$0xf]
        %v785 = vld [vmem:[%s775 + $0x24] sm:$0xf]
        %v786 = vld [vmem:[%s775 + $0x28] sm:$0xf]
        %v787 = vld [vmem:[%s775 + $0x2c] sm:$0xf]
        %v788 = vld [vmem:[%s775 + $0x30] sm:$0xf]
        %v789 = vld [vmem:[%s775 + $0x34] sm:$0xf]
        %v790 = vld [vmem:[%s775 + $0x38] sm:$0xf]
        %v791 = vld [vmem:[%s775 + $0x3c] sm:$0xf]
        %v808 = vunpack.c.l.b16 %v776
        %v809 = vunpack.c.l.b16 %v777
        %v810 = vunpack.c.l.b16 %v778
        %v811 = vunpack.c.l.b16 %v779
        %v812 = vunpack.c.l.b16 %v780
        %v813 = vunpack.c.l.b16 %v781
        %v814 = vunpack.c.l.b16 %v782
        %v815 = vunpack.c.l.b16 %v783
        %v816 = vunpack.c.l.b16 %v784
        %v817 = vunpack.c.l.b16 %v785
        %v818 = vunpack.c.l.b16 %v786
        %v819 = vunpack.c.l.b16 %v787
        %v820 = vunpack.c.l.b16 %v788
        %v821 = vunpack.c.l.b16 %v789
        %v822 = vunpack.c.l.b16 %v790
        %v823 = vunpack.c.l.b16 %v791
        %v824 = vpack.c.b16 %v809, %v808
        %v825 = vpack.c.b16 %v811, %v810
        %v826 = vpack.c.b16 %v813, %v812
        %v827 = vpack.c.b16 %v815, %v814
        %v828 = vpack.c.b16 %v817, %v816
        %v829 = vpack.c.b16 %v819, %v818
        %v830 = vpack.c.b16 %v821, %v820
        %v831 = vpack.c.b16 %v823, %v822
        %840 = vmatprep.subr.bf16.mxu0 0
        %841 = vmatpush1.bf16.msra.mxu0 %v824
        %842 = vmatprep.subr.bf16.mxu0 0
        %843 = vmatpush1.bf16.msra.mxu0 %v825
        %844 = vmatprep.subr.bf16.mxu0 0
        %845 = vmatpush1.bf16.msra.mxu0 %v826
        %846 = vmatprep.subr.bf16.mxu0 0
        %847 = vmatpush1.bf16.msra.mxu0 %v827
        %848 = vmatprep.subr.bf16.mxu0 0
        %849 = vmatpush1.bf16.msra.mxu0 %v828
        %850 = vmatprep.subr.bf16.mxu0 0
        %851 = vmatpush1.bf16.msra.mxu0 %v829
        %852 = vmatprep.subr.bf16.mxu0 0
        %853 = vmatpush1.bf16.msra.mxu0 %v830
        %854 = vmatprep.subr.bf16.mxu0 0
        %855 = vmatpush1.bf16.msra.mxu0 %v831
        %856 = vmatprep.subr.bf16.mxu0 0
        %857 = vmatpush1.bf16.msra.mxu0 0
        %858 = vmatprep.subr.bf16.mxu0 0
        %859 = vmatpush1.bf16.msra.mxu0 0
        %860 = vmatprep.subr.bf16.mxu0 0
        %861 = vmatpush1.bf16.msra.mxu0 0
        %862 = vmatprep.subr.bf16.mxu0 0
        %863 = vmatpush1.bf16.msra.mxu0 0
        %864 = vmatprep.subr.bf16.mxu0 0
        %865 = vmatpush1.bf16.msra.mxu0 0
        %866 = vmatprep.subr.bf16.mxu0 0
        %867 = vmatpush1.bf16.msra.mxu0 0
        %868 = vmatprep.subr.bf16.mxu0 0
        %869 = vmatpush1.bf16.msra.mxu0 0
        %870 = vmatprep.subr.bf16.mxu0 0
        %871 = vmatpush1.bf16.msra.mxu0 0
        %872 = vmatprep.mubr.bf16.mxu0 0
        %873 = vmatmul.mubr.bf16.gmra.mrb[0].mxu0 %v317
        %v874 = vpop.f32.mrb[0].mxu0
        %v875 = vadd.f32 0.0, %v874
        %v876 = vpop.f32.mrb[0].mxu0
        %v877 = vpop.f32.mrb[0].mxu0
        %v878 = vadd.f32 0.0, %v877
        %v879 = vpop.f32.mrb[0].mxu0
        %880 = vdwg.mxu0
        %v881 = vpack.c.bf16 %v878, %v875
        %882 = vst.msk [vmem:[#allocation2] sm:$0xff] %vm409, %v881
        %s883 = scalar_lea.vmem %s287, 256
        %v884 = vld [vmem:[%s883] sm:$0xf]
        %v885 = vld [vmem:[%s883 + $0x4] sm:$0xf]
        %v886 = vld [vmem:[%s883 + $0x8] sm:$0xf]
        %v887 = vld [vmem:[%s883 + $0xc] sm:$0xf]
        %v888 = vld [vmem:[%s883 + $0x10] sm:$0xf]
        %v889 = vld [vmem:[%s883 + $0x14] sm:$0xf]
        %v890 = vld [vmem:[%s883 + $0x18] sm:$0xf]
        %v891 = vld [vmem:[%s883 + $0x1c] sm:$0xf]
        %v892 = vld [vmem:[%s883 + $0x20] sm:$0xf]
        %v893 = vld [vmem:[%s883 + $0x24] sm:$0xf]
        %v894 = vld [vmem:[%s883 + $0x28] sm:$0xf]
        %v895 = vld [vmem:[%s883 + $0x2c] sm:$0xf]
        %v896 = vld [vmem:[%s883 + $0x30] sm:$0xf]
        %v897 = vld [vmem:[%s883 + $0x34] sm:$0xf]
        %v898 = vld [vmem:[%s883 + $0x38] sm:$0xf]
        %v899 = vld [vmem:[%s883 + $0x3c] sm:$0xf]
        %v916 = vunpack.c.l.b16 %v884
        %v917 = vunpack.c.l.b16 %v885
        %v918 = vunpack.c.l.b16 %v886
        %v919 = vunpack.c.l.b16 %v887
        %v920 = vunpack.c.l.b16 %v888
        %v921 = vunpack.c.l.b16 %v889
        %v922 = vunpack.c.l.b16 %v890
        %v923 = vunpack.c.l.b16 %v891
        %v924 = vunpack.c.l.b16 %v892
        %v925 = vunpack.c.l.b16 %v893
        %v926 = vunpack.c.l.b16 %v894
        %v927 = vunpack.c.l.b16 %v895
        %v928 = vunpack.c.l.b16 %v896
        %v929 = vunpack.c.l.b16 %v897
        %v930 = vunpack.c.l.b16 %v898
        %v931 = vunpack.c.l.b16 %v899
        %v932 = vpack.c.b16 %v917, %v916
        %v933 = vpack.c.b16 %v919, %v918
        %v934 = vpack.c.b16 %v921, %v920
        %v935 = vpack.c.b16 %v923, %v922
        %v936 = vpack.c.b16 %v925, %v924
        %v937 = vpack.c.b16 %v927, %v926
        %v938 = vpack.c.b16 %v929, %v928
        %v939 = vpack.c.b16 %v931, %v930
        %948 = vmatprep.subr.bf16.mxu0 0
        %949 = vmatpush1.bf16.msra.mxu0 %v932
        %950 = vmatprep.subr.bf16.mxu0 0
        %951 = vmatpush1.bf16.msra.mxu0 %v933
        %952 = vmatprep.subr.bf16.mxu0 0
        %953 = vmatpush1.bf16.msra.mxu0 %v934
        %954 = vmatprep.subr.bf16.mxu0 0
        %955 = vmatpush1.bf16.msra.mxu0 %v935
        %956 = vmatprep.subr.bf16.mxu0 0
        %957 = vmatpush1.bf16.msra.mxu0 %v936
        %958 = vmatprep.subr.bf16.mxu0 0
        %959 = vmatpush1.bf16.msra.mxu0 %v937
        %960 = vmatprep.subr.bf16.mxu0 0
        %961 = vmatpush1.bf16.msra.mxu0 %v938
        %962 = vmatprep.subr.bf16.mxu0 0
        %963 = vmatpush1.bf16.msra.mxu0 %v939
        %964 = vmatprep.subr.bf16.mxu0 0
        %965 = vmatpush1.bf16.msra.mxu0 0
        %966 = vmatprep.subr.bf16.mxu0 0
        %967 = vmatpush1.bf16.msra.mxu0 0
        %968 = vmatprep.subr.bf16.mxu0 0
        %969 = vmatpush1.bf16.msra.mxu0 0
        %970 = vmatprep.subr.bf16.mxu0 0
        %971 = vmatpush1.bf16.msra.mxu0 0
        %972 = vmatprep.subr.bf16.mxu0 0
        %973 = vmatpush1.bf16.msra.mxu0 0
        %974 = vmatprep.subr.bf16.mxu0 0
        %975 = vmatpush1.bf16.msra.mxu0 0
        %976 = vmatprep.subr.bf16.mxu0 0
        %977 = vmatpush1.bf16.msra.mxu0 0
        %978 = vmatprep.subr.bf16.mxu0 0
        %979 = vmatpush1.bf16.msra.mxu0 0
        %980 = vmatprep.mubr.bf16.mxu0 0
        %981 = vmatmul.mubr.bf16.gmra.mrb[0].mxu0 %v317
        %v982 = vpop.f32.mrb[0].mxu0
        %v983 = vadd.f32 0.0, %v982
        %v984 = vpop.f32.mrb[0].mxu0
        %v985 = vpop.f32.mrb[0].mxu0
        %v986 = vadd.f32 0.0, %v985
        %v987 = vpop.f32.mrb[0].mxu0
        %988 = vdwg.mxu0
        %v989 = vpack.c.bf16 %v986, %v983
        %990 = vst.msk [vmem:[#allocation2 + $0x8] sm:$0xff] %vm409, %v989
        %s991 = scalar_lea.vmem %s287, 320
        %v992 = vld [vmem:[%s991] sm:$0xf]
        %v993 = vld [vmem:[%s991 + $0x4] sm:$0xf]
        %v994 = vld [vmem:[%s991 + $0x8] sm:$0xf]
        %v995 = vld [vmem:[%s991 + $0xc] sm:$0xf]
        %v996 = vld [vmem:[%s991 + $0x10] sm:$0xf]
        %v997 = vld [vmem:[%s991 + $0x14] sm:$0xf]
        %v998 = vld [vmem:[%s991 + $0x18] sm:$0xf]
        %v999 = vld [vmem:[%s991 + $0x1c] sm:$0xf]
        %v1000 = vld [vmem:[%s991 + $0x20] sm:$0xf]
        %v1001 = vld [vmem:[%s991 + $0x24] sm:$0xf]
        %v1002 = vld [vmem:[%s991 + $0x28] sm:$0xf]
        %v1003 = vld [vmem:[%s991 + $0x2c] sm:$0xf]
        %v1004 = vld [vmem:[%s991 + $0x30] sm:$0xf]
        %v1005 = vld [vmem:[%s991 + $0x34] sm:$0xf]
        %v1006 = vld [vmem:[%s991 + $0x38] sm:$0xf]
        %v1007 = vld [vmem:[%s991 + $0x3c] sm:$0xf]
        %v1024 = vunpack.c.l.b16 %v992
        %v1025 = vunpack.c.l.b16 %v993
        %v1026 = vunpack.c.l.b16 %v994
        %v1027 = vunpack.c.l.b16 %v995
        %v1028 = vunpack.c.l.b16 %v996
        %v1029 = vunpack.c.l.b16 %v997
        %v1030 = vunpack.c.l.b16 %v998
        %v1031 = vunpack.c.l.b16 %v999
        %v1032 = vunpack.c.l.b16 %v1000
        %v1033 = vunpack.c.l.b16 %v1001
        %v1034 = vunpack.c.l.b16 %v1002
        %v1035 = vunpack.c.l.b16 %v1003
        %v1036 = vunpack.c.l.b16 %v1004
        %v1037 = vunpack.c.l.b16 %v1005
        %v1038 = vunpack.c.l.b16 %v1006
        %v1039 = vunpack.c.l.b16 %v1007
        %v1040 = vpack.c.b16 %v1025, %v1024
        %v1041 = vpack.c.b16 %v1027, %v1026
        %v1042 = vpack.c.b16 %v1029, %v1028
        %v1043 = vpack.c.b16 %v1031, %v1030
        %v1044 = vpack.c.b16 %v1033, %v1032
        %v1045 = vpack.c.b16 %v1035, %v1034
        %v1046 = vpack.c.b16 %v1037, %v1036
        %v1047 = vpack.c.b16 %v1039, %v1038
        %1056 = vmatprep.subr.bf16.mxu0 0
        %1057 = vmatpush1.bf16.msra.mxu0 %v1040
        %1058 = vmatprep.subr.bf16.mxu0 0
        %1059 = vmatpush1.bf16.msra.mxu0 %v1041
        %1060 = vmatprep.subr.bf16.mxu0 0
        %1061 = vmatpush1.bf16.msra.mxu0 %v1042
        %1062 = vmatprep.subr.bf16.mxu0 0
        %1063 = vmatpush1.bf16.msra.mxu0 %v1043
        %1064 = vmatprep.subr.bf16.mxu0 0
        %1065 = vmatpush1.bf16.msra.mxu0 %v1044
        %1066 = vmatprep.subr.bf16.mxu0 0
        %1067 = vmatpush1.bf16.msra.mxu0 %v1045
        %1068 = vmatprep.subr.bf16.mxu0 0
        %1069 = vmatpush1.bf16.msra.mxu0 %v1046
        %1070 = vmatprep.subr.bf16.mxu0 0
        %1071 = vmatpush1.bf16.msra.mxu0 %v1047
        %1072 = vmatprep.subr.bf16.mxu0 0
        %1073 = vmatpush1.bf16.msra.mxu0 0
        %1074 = vmatprep.subr.bf16.mxu0 0
        %1075 = vmatpush1.bf16.msra.mxu0 0
        %1076 = vmatprep.subr.bf16.mxu0 0
        %1077 = vmatpush1.bf16.msra.mxu0 0
        %1078 = vmatprep.subr.bf16.mxu0 0
        %1079 = vmatpush1.bf16.msra.mxu0 0
        %1080 = vmatprep.subr.bf16.mxu0 0
        %1081 = vmatpush1.bf16.msra.mxu0 0
        %1082 = vmatprep.subr.bf16.mxu0 0
        %1083 = vmatpush1.bf16.msra.mxu0 0
        %1084 = vmatprep.subr.bf16.mxu0 0
        %1085 = vmatpush1.bf16.msra.mxu0 0
        %1086 = vmatprep.subr.bf16.mxu0 0
        %1087 = vmatpush1.bf16.msra.mxu0 0
        %1088 = vmatprep.mubr.bf16.mxu0 0
        %1089 = vmatmul.mubr.bf16.gmra.mrb[0].mxu0 %v317
        %v1090 = vpop.f32.mrb[0].mxu0
        %v1091 = vadd.f32 0.0, %v1090
        %v1092 = vpop.f32.mrb[0].mxu0
        %v1093 = vpop.f32.mrb[0].mxu0
        %v1094 = vadd.f32 0.0, %v1093
        %v1095 = vpop.f32.mrb[0].mxu0
        %1096 = vdwg.mxu0
        %v1097 = vpack.c.bf16 %v1094, %v1091
        %1098 = vst.msk [vmem:[#allocation2 + $0x10] sm:$0xff] %vm409, %v1097
        %v1099 = vld [vmem:[#allocation2] sm:$0xff]
        %v1100 = vld [vmem:[#allocation2 + $0x8] sm:$0xff]
        %v1101 = vld [vmem:[#allocation2 + $0x10] sm:$0xff]
        %1102 = vmatprep.subr.bf16.mxu0 0
        %1103 = vmatpush1.bf16.msra.mxu0 %v1099
        %1104 = vmatprep.subr.bf16.mxu0 0
        %1105 = vmatpush1.bf16.msra.mxu0 %v1100
        %1106 = vmatprep.subr.bf16.mxu0 0
        %1107 = vmatpush1.bf16.msra.mxu0 %v1101
        %1108 = vmatprep.subr.bf16.mxu0 0
        %1109 = vmatpush1.bf16.msra.mxu0 0
        %1110 = vmatprep.subr.bf16.mxu0 0
        %1111 = vmatpush1.bf16.msra.mxu0 0
        %1112 = vmatprep.subr.bf16.mxu0 0
        %1113 = vmatpush1.bf16.msra.mxu0 0
        %1114 = vmatprep.subr.bf16.mxu0 0
        %1115 = vmatpush1.bf16.msra.mxu0 0
        %1116 = vmatprep.subr.bf16.mxu0 0
        %1117 = vmatpush1.bf16.msra.mxu0 0
        %1118 = vmatprep.subr.bf16.mxu0 0
        %1119 = vmatpush1.bf16.msra.mxu0 0
        %1120 = vmatprep.subr.bf16.mxu0 0
        %1121 = vmatpush1.bf16.msra.mxu0 0
        %1122 = vmatprep.subr.bf16.mxu0 0
        %1123 = vmatpush1.bf16.msra.mxu0 0
        %1124 = vmatprep.subr.bf16.mxu0 0
        %1125 = vmatpush1.bf16.msra.mxu0 0
        %1126 = vmatprep.subr.bf16.mxu0 0
        %1127 = vmatpush1.bf16.msra.mxu0 0
        %1128 = vmatprep.subr.bf16.mxu0 0
        %1129 = vmatpush1.bf16.msra.mxu0 0
        %1130 = vmatprep.subr.bf16.mxu0 0
        %1131 = vmatpush1.bf16.msra.mxu0 0
        %1132 = vmatprep.subr.bf16.mxu0 0
        %1133 = vmatpush1.bf16.msra.mxu0 0
        %1134 = vmatprep.mubr.bf16.mxu0 0
        %1135 = vmatmul.mubr.bf16.gmra.mrb[0].mxu0 %v642
        %v1136 = vpop.f32.mrb[0].mxu0
        %v1137 = vadd.f32 0.0, %v1136
        %v1138 = vpop.f32.mrb[0].mxu0
        %v1139 = vpop.f32.mrb[0].mxu0
        %v1140 = vadd.f32 0.0, %v1139
        %v1141 = vpop.f32.mrb[0].mxu0
        %1142 = vmatprep.mubr.bf16.mxu0 0
        %1143 = vmatmul.mubr.bf16.gmra.mrb[0].mxu0 %v645
        %v1144 = vpop.f32.mrb[0].mxu0
        %v1145 = vadd.f32 0.0, %v1144
        %v1146 = vpop.f32.mrb[0].mxu0
        %v1147 = vpop.f32.mrb[0].mxu0
        %v1148 = vadd.f32 0.0, %v1147
        %v1149 = vpop.f32.mrb[0].mxu0
        %1150 = vdwg.mxu0
        %v1151 = vsel %vm409, %v1137, 0.0
        %v1152 = vsel %vm409, %v1140, 0.0
        %v1153 = vadd.f32 %v1151, %v1152
        %v1154 = vsel %vm409, %v1145, 0.0
        %v1155 = vadd.f32 %v1153, %v1154
        %v1156 = vsel %vm409, %v1148, 0.0
        %v1157 = vadd.f32 %v1155, %v1156
        %1158 = vadd.xlane.f32.xlu0 %v1157
        %v1159 = vpop.xlane.xlu0 %1158
        %v1160 = vrot.slane %v1159, 4
        %v1161 = vadd.f32 %v1159, %v1160
        %v1162 = vrot.slane %v1161, 2
        %v1163 = vadd.f32 %v1161, %v1162
        %v1164 = vrot.slane %v1163, 1
        %v1165 = vadd.f32 %v1163, %v1164
        %s1166 = vtos %v1165
        %v1167 = vstv %s1166
        %v1168 = vmul.f32 %v1167, 0.0009765625
        %v1169 = vsub.f32 %v1137, %v1168
        %v1170 = vsub.f32 %v1140, %v1168
        %v1171 = vsub.f32 %v1145, %v1168
        %v1172 = vsub.f32 %v1148, %v1168
        %v1173 = vmul.f32 %v1169, %v1169
        %v1174 = vmul.f32 %v1170, %v1170
        %v1175 = vmul.f32 %v1171, %v1171
        %v1176 = vmul.f32 %v1172, %v1172
        %v1177 = vsel %vm409, %v1173, 0.0
        %v1178 = vsel %vm409, %v1174, 0.0
        %v1179 = vadd.f32 %v1177, %v1178
        %v1180 = vsel %vm409, %v1175, 0.0
        %v1181 = vadd.f32 %v1179, %v1180
        %v1182 = vsel %vm409, %v1176, 0.0
        %v1183 = vadd.f32 %v1181, %v1182
        %1184 = vadd.xlane.f32.xlu0 %v1183
        %v1185 = vpop.xlane.xlu0 %1184
        %v1186 = vrot.slane %v1185, 4
        %v1187 = vadd.f32 %v1185, %v1186
        %v1188 = vrot.slane %v1187, 2
        %v1189 = vadd.f32 %v1187, %v1188
        %v1190 = vrot.slane %v1189, 1
        %v1191 = vadd.f32 %v1189, %v1190
        %s1192 = vtos %v1191
        %v1193 = vstv %s1192
        %v1194 = vmul.f32 %v1193, 0.0009765625
        %s1195 = sadd.s32 %s740, 1
        %v1196 = vadd.f32 %v1194, 1e-05
        %v1197 = vrsqrt.pop %v1196
        %v1198 = vmul.f32 %v1169, %v1197
        %v1199 = vmul.f32 %v1170, %v1197
        %v1200 = vmul.f32 %v1171, %v1197
        %v1201 = vmul.f32 %v1172, %v1197
        %s1202 = sld [smem:[#allocation3 + %s1195]]
        %v1203 = vstv %s1202
        %v1204 = vmul.f32 %v1198, %v1203
        %v1205 = vmul.f32 %v1199, %v1203
        %v1206 = vmul.f32 %v1200, %v1203
        %v1207 = vmul.f32 %v1201, %v1203
        %s1208 = sld [smem:[#allocation6 + %s1195]]
        %v1209 = vstv %s1208
        %v1210 = vadd.f32 %v1204, %v1209
        %v1211 = vadd.f32 %v1205, %v1209
        %v1212 = vadd.f32 %v1206, %v1209
        %v1213 = vadd.f32 %v1207, %v1209
        %vm1214 = vcmp.ge.f32.partialorder %v1210, 0.0
        %vm1215 = vcmp.ge.f32.partialorder %v1211, 0.0
        %vm1216 = vcmp.ge.f32.partialorder %v1212, 0.0
        %vm1217 = vcmp.ge.f32.partialorder %v1213, 0.0
        %v1218 = vmul.f32 %v1210, 0.01
        %v1219 = vmul.f32 %v1211, 0.01
        %v1220 = vmul.f32 %v1212, 0.01
        %v1221 = vmul.f32 %v1213, 0.01
        %v1222 = vsel %vm1214, %v1210, %v1218
        %v1223 = vsel %vm1215, %v1211, %v1219
        %v1224 = vsel %vm1216, %v1212, %v1220
        %v1225 = vsel %vm1217, %v1213, %v1221
        %s1226 = scalar_lea.vmem %s276, 32 [#allocation8]
        %1227 = vst.msk [vmem:[%s1226] sm:$0xff] %vm409, %v1222
        %1228 = vst.msk [vmem:[%s1226 + $0x8] sm:$0xff] %vm409, %v1223
        %1229 = vst.msk [vmem:[%s1226 + $0x10] sm:$0xff] %vm409, %v1224
        %1230 = vst.msk [vmem:[%s1226 + $0x18] sm:$0xff] %vm409, %v1225
        %s1231 = sand.u32 %s158, 1
        %s1232 = scalar_lea.sflag [#allocation4], %s1231
        %s1233 = sand.u32 %s158, 1
        %s1234 = smul.addr %s1233, 64
        %s1235 = scalar_lea.vmem [#allocation8], %s1234
        // Predicated region
        $region49: #{tpu_custom_call.1} parent=39 // pred_check
          %p1236 = pneg %p168
        $region50: #{tpu_custom_call.1} parent=39 // pred_check_branch
          %1238 = sbr.rel (%p1236) target = $region52
        $region51: #{tpu_custom_call.1} parent=39 // pred_region
          %s1239 = smul.u32 2, %s25
          %s1241 = ssub.s32 1024, 1024
          %1242 = vsyncadd %s1232, %s1241
          %s1243 = smul.addr %s1239, 4
          %s1244 = smul.addr %s26, 8
          %s1245 = sadd.s32 %s1243, %s1244
          %s1246 = smul.addr %s1245, 128
          %s1247 = scalar_lea.hbm %s5, %s1246
          %s1248 = sshll.u32 %s1235, 4
          %s1249 = int_to_ptr.vmem [resolvable:$true] %s1248
          %1254 = dma.vmem_to_hbm [thread:$0]  %s1249, 1024, %s1247, %s1232, 128, 128, 8
        $region52: #{tpu_custom_call.1} parent=39 // pred_fallthru
          _
      $region40: #{tpu_custom_call.1} parent=5 // pred_fallthru
        _
      %p1255 = scmp.le.s32.totalorder 2, %s16
      // Predicated region
      $region53: #{tpu_custom_call.1} parent=5 // pred_check
        %p1256 = pneg %p1255
      $region54: #{tpu_custom_call.1} parent=5 // pred_check_branch
        %1258 = sbr.rel (%p1256) target = $region56
      $region55: #{tpu_custom_call.1} parent=5 // pred_region
        %s1259 = ssub.s32 %s16, 2
        // Predicated region
        $region57: #{tpu_custom_call.1} parent=55 // pred_check
          %p1260 = pneg %p174
        $region58: #{tpu_custom_call.1} parent=55 // pred_check_branch
          %1262 = sbr.rel (%p1260) target = $region60
        $region59: #{tpu_custom_call.1} parent=55 // pred_region
          %s1263 = sand.u32 %s159, 1
          %s1264 = scalar_lea.sflag [#allocation4], %s1263
          %s1265 = sand.u32 %s159, 1
          %s1266 = smul.addr %s1265, 64
          %s1267 = scalar_lea.vmem [#allocation8], %s1266
          %1268 = dma.done %s1264, 1024
        $region60: #{tpu_custom_call.1} parent=55 // pred_fallthru
          _
      $region56: #{tpu_custom_call.1} parent=5 // pred_fallthru
        _
    $region6: #{tpu_custom_call.1} parent=1 // loop_footer
      %s20 = sadd.s32 1, %s16
    $region7: #{tpu_custom_call.1} parent=1 // loop_footer_branch
      %15 = sbr.rel target = $region3
    $region8: #{tpu_custom_call.1} parent=1 // loop_exit
      _
    %1269 = vsyncpa [#allocation4], 1
    %s1270 = scalar_lea.sflag [#allocation4], 1
    %1271 = vsyncpa %s1270, 1
    %1272 = vsyncpa [#allocation5], 1
    %s1273 = scalar_lea.sflag [#allocation5], 1
    %1274 = vsyncpa %s1273, 1
    %1275 = vsyncpa [#allocation7], 1

</llo_original>
